<compile_context>
chip_gen: v7x
topology: tpu7x:2x2x1
jax: 0.10.0
libtpu: 0.0.40
codegen_flags: <defaults>
</compile_context>

<pallas_src>
import jax
import jax.numpy as jnp
from jax.experimental import pallas as pl
from jax.experimental.pallas import tpu as pltpu


# ------------------------------- Pallas kernel ------------------------------ #

def recursive_layer_forward(series, params):
    """series: (B, in_features, T) float32 -> (B, out_features) float32."""
    B, I, T = series.shape
    H = params["whh0"].shape[0]          # weights stored transposed: (H, 3H)
    H3 = 3 * H
    GP = ((H3 + 127) // 128) * 128       # 128-lane-aligned gate-slab width per slab
    BP = ((B + 7) // 8) * 8              # sublane-tile-aligned (padded) batch

    # --- Glue (layout plumbing only): time-major, batch padded to BP sublanes. ---
    x_tbi = jnp.transpose(series, (2, 0, 1))                         # (T, B, I)
    x_pad = jnp.zeros((T, BP, I), jnp.float32).at[:, :B, :].set(x_tbi)
    x2d = x_pad.reshape(T * BP, I)                                   # (T*BP, I)

    # --- Packed wavefront weights: lhs = [h0(k-1) | h1(k-2)] (BP, 2H). ---
    #     slab0 = gh0(k), slab1 = gi1(k-1), slab2 = gh1(k-1); each GP lanes wide.
    wpack = jnp.zeros((2 * H, 3 * GP), jnp.float32)
    wpack = wpack.at[:H, 0:H3].set(params["whh0"])
    wpack = wpack.at[:H, GP:GP + H3].set(params["wih1"])
    wpack = wpack.at[H:, 2 * GP:2 * GP + H3].set(params["whh1"])
    wpack = wpack.astype(jnp.bfloat16)                               # bf16 MXU operand

    bpack = jnp.zeros((1, 3 * GP), jnp.float32)
    bpack = bpack.at[:, 0:H3].set(params["bhh0"])
    bpack = bpack.at[:, GP:GP + H3].set(params["bih1"])
    bpack = bpack.at[:, 2 * GP:2 * GP + H3].set(params["bhh1"])

    wih0 = params["wih0"].astype(jnp.bfloat16)

    def kernel(x_ref, wih0_ref, bih0_ref, wpack_ref, bpack_ref, out_ref, gi0_ref):
        # Hoisted layer-0 input projection for all timesteps: one batched MXU matmul
        # (bf16 operands, f32 accumulation), bih0 folded in.
        gi0_ref[...] = (jnp.dot(x_ref[...].astype(jnp.bfloat16), wih0_ref[...],
                                preferred_element_type=jnp.float32)
                        + bih0_ref[...])                             # (T*BP, 3H) f32

        wpack_v = wpack_ref[...]                                     # loop-invariant bf16
        # Hoist the packed-bias broadcast out of the time loop.
        bias = jnp.broadcast_to(bpack_ref[...], (BP, 3 * GP))        # (BP, 3GP) f32

        def cell(gi, gh, h_prev):
            # Input/recurrent biases already folded into gi / gh; the n-gate bhh term
            # stays inside r * gh_n (PyTorch GRU semantics).
            rz = jax.nn.sigmoid(gi[:, :2 * H] + gh[:, :2 * H])       # fused r/z slab
            r = rz[:, :H]
            z = rz[:, H:]
            n = jnp.tanh(gi[:, 2 * H:] + r * gh[:, 2 * H:])
            return (1.0 - z) * n + z * h_prev

        def load_gi0(k):
            start = k * BP
            if not isinstance(k, int):                               # dynamic (fori) path
                start = pl.multiple_of(start, BP)
            return gi0_ref[pl.ds(start, BP), :]                      # aligned (BP, 3H)

        def fused_gates(h0, h1):
            h_cat = jnp.concatenate([h0, h1], axis=-1).astype(jnp.bfloat16)  # (BP, 2H)
            return (jnp.dot(h_cat, wpack_v, preferred_element_type=jnp.float32)
                    + bias)                                          # (BP, 3GP)

        def wavefront_step(k, carry):
            # carry = (h0(k-1), h1(k-2)); compute layer-0 step k and layer-1 step k-1,
            # which are mutually independent -> one MXU round-trip + pipelined cells.
            h0, h1 = carry
            g = fused_gates(h0, h1)
            h0n = cell(load_gi0(k), g[:, 0:H3], h0)                          # layer 0, t=k
            h1n = cell(g[:, GP:GP + H3], g[:, 2 * GP:2 * GP + H3], h1)       # layer 1, t=k-1
            return h0n, h1n

        zeros = jnp.zeros((BP, H), jnp.float32)
        # Prologue (k = 0): layer-0 only; h0(-1) = 0 so gh0 = bhh0 (= bias slab 0).
        h0 = cell(load_gi0(0), bias[:, 0:H3], zeros)
        h1 = zeros

        if T <= 32:
            # Fully unrolled: static slice offsets, full LLO scheduling visibility.
            for k in range(1, T):
                h0, h1 = wavefront_step(k, (h0, h1))
        else:
            h0, h1 = jax.lax.fori_loop(1, T, wavefront_step, (h0, h1), unroll=4)

        # Epilogue: layer-1 step T-1 (slab0 of g is computed but discarded).
        g = fused_gates(h0, h1)
        h1 = cell(g[:, GP:GP + H3], g[:, 2 * GP:2 * GP + H3], h1)

        out_ref[...] = h1.astype(out_ref.dtype)

    out = pl.pallas_call(
        kernel,
        out_shape=jax.ShapeDtypeStruct((BP, H), jnp.float32),
        scratch_shapes=[pltpu.VMEM((T * BP, H3), jnp.float32)],      # precomputed gi0
    )(x2d, wih0, params["bih0"], wpack, bpack)

    return out[:B]                                                   # drop batch padding


# ----------------------------- pure-JAX reference --------------------------- #

def _gru_cell_ref(x, h, wih_t, whh_t, bih, bhh):
    """Standard (unfused, f32) PyTorch GRU cell for verification."""
    H = h.shape[-1]
    gi = jnp.dot(x, wih_t) + bih
    gh = jnp.dot(h, whh_t) + bhh
    r = jax.nn.sigmoid(gi[:, 0:H] + gh[:, 0:H])
    z = jax.nn.sigmoid(gi[:, H:2 * H] + gh[:, H:2 * H])
    n = jnp.tanh(gi[:, 2 * H:] + r * gh[:, 2 * H:])
    return (1.0 - z) * n + z * h


def _ref_gru2_last_hidden(series, params):
    x = jnp.transpose(series, (0, 2, 1))          # (B, T, I) batch_first
    B = x.shape[0]
    H = params["whh0"].shape[0]

    def step(carry, x_t):
        h0, h1 = carry
        h0 = _gru_cell_ref(x_t, h0, params["wih0"], params["whh0"],
                           params["bih0"], params["bhh0"])
        h1 = _gru_cell_ref(h0, h1, params["wih1"], params["whh1"],
                           params["bih1"], params["bhh1"])
        return (h0, h1), None

    h0 = jnp.zeros((B, H), jnp.float32)
    h1 = jnp.zeros((B, H), jnp.float32)
    (h0, h1), _ = jax.lax.scan(step, (h0, h1), jnp.transpose(x, (1, 0, 2)))
    return h1


# ----------------------------------- main ----------------------------------- #

def _init_params(key, in_features, hidden):
    """Deterministic init matching PyTorch GRU parameter shapes (stored transposed)."""
    k = 1.0 / jnp.sqrt(hidden)
    keys = jax.random.split(key, 8)
    u = lambda kk, shape: jax.random.uniform(kk, shape, jnp.float32, -k, k)
    return {
        # layer 0: weight_ih (3H, I) -> transposed (I, 3H); weight_hh (3H, H) -> (H, 3H)
        "wih0": u(keys[0], (in_features, 3 * hidden)),
        "whh0": u(keys[1], (hidden, 3 * hidden)),
        "bih0": u(keys[2], (1, 3 * hidden)),
        "bhh0": u(keys[3], (1, 3 * hidden)),
        # layer 1: input is hidden
        "wih1": u(keys[4], (hidden, 3 * hidden)),
        "whh1": u(keys[5], (hidden, 3 * hidden)),
        "bih1": u(keys[6], (1, 3 * hidden)),
        "bhh1": u(keys[7], (1, 3 * hidden)),
    }


if __name__ == "__main__":
    B, in_features, out_features, T = 2, 4, 32, 8

    key = jax.random.PRNGKey(0)
    k_params, k_x = jax.random.split(key)
    params = _init_params(k_params, in_features, out_features)

    # series shaped like the PyTorch input: (B, in_features, T)
    series = jax.random.normal(k_x, (B, in_features, T), jnp.float32)

    fwd = jax.jit(recursive_layer_forward)
    out = jax.block_until_ready(fwd(series, params))

    ref = jax.block_until_ready(_ref_gru2_last_hidden(series, params))
    assert out.shape == (B, out_features)
    # Tolerance loosened vs. 1e-5 because MXU operands are bf16 (f32 accumulation);
    # hidden states are O(0.1-1), so this still catches structural/indexing bugs.
    assert jnp.allclose(out, ref, atol=5e-2, rtol=5e-2), "mismatch vs pure-JAX GRU reference"

    print("KERNEL_OK")
</pallas_src>

<mosaic_0001>
module attributes {stable_mosaic.version = 11 : i64} {
  func.func @kernel(%arg0: memref<64x4xf32, #tpu.memory_space<vmem>>, %arg1: memref<4x96xbf16, #tpu.memory_space<vmem>>, %arg2: memref<1x96xf32, #tpu.memory_space<vmem>>, %arg3: memref<64x384xbf16, #tpu.memory_space<vmem>>, %arg4: memref<1x384xf32, #tpu.memory_space<vmem>>, %arg5: memref<8x32xf32, #tpu.memory_space<vmem>>, %arg6: memref<64x96xf32, #tpu.memory_space<vmem>>) attributes {dimension_semantics = [], scalar_prefetch = 0 : i64, scratch_operands = 1 : i64, tpu.core_type = #tpu.core_type<tc>} {
    %c0 = arith.constant 0 : index
    %c0_0 = arith.constant 0 : index
    %0 = vector.load %arg0[%c0, %c0_0] : memref<64x4xf32, #tpu.memory_space<vmem>>, vector<64x4xf32>
    %1 = arith.truncf %0 : vector<64x4xf32> to vector<64x4xbf16>
    %c0_1 = arith.constant 0 : index
    %c0_2 = arith.constant 0 : index
    %2 = vector.load %arg1[%c0_1, %c0_2] : memref<4x96xbf16, #tpu.memory_space<vmem>>, vector<4x96xbf16>
    %cst = arith.constant dense<0.000000e+00> : vector<64x96xf32>
    %3 = tpu.matmul %1, %2, %cst {dimension_numbers = #tpu.dot_dimension_numbers<[1], [0], [0], [1], [0, 0, 1, 1], [], []>} : vector<64x4xbf16>, vector<4x96xbf16>, vector<64x96xf32> -> vector<64x96xf32>
    %c0_3 = arith.constant 0 : index
    %c0_4 = arith.constant 0 : index
    %4 = vector.load %arg2[%c0_3, %c0_4] : memref<1x96xf32, #tpu.memory_space<vmem>>, vector<1x96xf32>
    %5 = vector.broadcast %4 : vector<1x96xf32> to vector<64x96xf32>
    %6 = arith.addf %3, %5 : vector<64x96xf32>
    %c0_5 = arith.constant 0 : index
    %c0_6 = arith.constant 0 : index
    %7 = vector.load %arg6[%c0_5, %c0_6] : memref<64x96xf32, #tpu.memory_space<vmem>>, vector<64x96xf32>
    tpu.vector_store %arg6[%c0_5, %c0_6], %6 {strides = array<i32>} : memref<64x96xf32, #tpu.memory_space<vmem>>, vector<64x96xf32>,
    %c0_7 = arith.constant 0 : index
    %c0_8 = arith.constant 0 : index
    %8 = vector.load %arg3[%c0_7, %c0_8] : memref<64x384xbf16, #tpu.memory_space<vmem>>, vector<64x384xbf16>
    %c0_9 = arith.constant 0 : index
    %c0_10 = arith.constant 0 : index
    %9 = vector.load %arg4[%c0_9, %c0_10] : memref<1x384xf32, #tpu.memory_space<vmem>>, vector<1x384xf32>
    %10 = vector.shape_cast %9 : vector<1x384xf32> to vector<1x384xf32>
    %11 = vector.broadcast %10 : vector<1x384xf32> to vector<8x384xf32>
    %cst_11 = arith.constant 0.000000e+00 : f32
    %12 = vector.broadcast %cst_11 : f32 to vector<8x32xf32>
    %c0_12 = arith.constant 0 : index
    %c0_13 = arith.constant 0 : index
    %13 = vector.load %arg6[%c0_12, %c0_13] : memref<64x96xf32, #tpu.memory_space<vmem>>, vector<8x96xf32>
    %14 = vector.extract_strided_slice %11 {offsets = [0, 0], sizes = [8, 96], strides = [1, 1]} : vector<8x384xf32> to vector<8x96xf32>
    %15 = vector.extract_strided_slice %13 {offsets = [0, 0], sizes = [8, 64], strides = [1, 1]} : vector<8x96xf32> to vector<8x64xf32>
    %16 = vector.extract_strided_slice %14 {offsets = [0, 0], sizes = [8, 64], strides = [1, 1]} : vector<8x96xf32> to vector<8x64xf32>
    %17 = arith.addf %15, %16 : vector<8x64xf32>
    %18 = arith.negf %17 : vector<8x64xf32>
    %19 = math.exp %18 : vector<8x64xf32>
    %cst_14 = arith.constant 1.000000e+00 : f32
    %20 = vector.broadcast %cst_14 : f32 to vector<8x64xf32>
    %21 = arith.addf %20, %19 : vector<8x64xf32>
    %22 = arith.divf %20, %21 : vector<8x64xf32>
    %23 = vector.extract_strided_slice %22 {offsets = [0, 0], sizes = [8, 32], strides = [1, 1]} : vector<8x64xf32> to vector<8x32xf32>
    %24 = vector.extract_strided_slice %22 {offsets = [0, 32], sizes = [8, 32], strides = [1, 1]} : vector<8x64xf32> to vector<8x32xf32>
    %25 = vector.extract_strided_slice %13 {offsets = [0, 64], sizes = [8, 32], strides = [1, 1]} : vector<8x96xf32> to vector<8x32xf32>
    %26 = vector.extract_strided_slice %14 {offsets = [0, 64], sizes = [8, 32], strides = [1, 1]} : vector<8x96xf32> to vector<8x32xf32>
    %27 = arith.mulf %23, %26 : vector<8x32xf32>
    %28 = arith.addf %25, %27 : vector<8x32xf32>
    %29 = math.tanh %28 : vector<8x32xf32>
    %cst_15 = arith.constant 1.000000e+00 : f32
    %30 = vector.broadcast %cst_15 : f32 to vector<8x32xf32>
    %31 = arith.subf %30, %24 : vector<8x32xf32>
    %32 = arith.mulf %31, %29 : vector<8x32xf32>
    %33 = arith.mulf %24, %12 : vector<8x32xf32>
    %34 = arith.addf %32, %33 : vector<8x32xf32>
    %35 = tpu.concatenate %34, %12 in 1 : vector<8x32xf32>, vector<8x32xf32> -> vector<8x64xf32>
    %36 = arith.truncf %35 : vector<8x64xf32> to vector<8x64xbf16>
    %cst_16 = arith.constant dense<0.000000e+00> : vector<8x384xf32>
    %37 = tpu.matmul %36, %8, %cst_16 {dimension_numbers = #tpu.dot_dimension_numbers<[1], [0], [0], [1], [0, 0, 1, 1], [], []>} : vector<8x64xbf16>, vector<64x384xbf16>, vector<8x384xf32> -> vector<8x384xf32>
    %38 = arith.addf %37, %11 : vector<8x384xf32>
    %c8 = arith.constant 8 : index
    %c0_17 = arith.constant 0 : index
    %39 = vector.load %arg6[%c8, %c0_17] : memref<64x96xf32, #tpu.memory_space<vmem>>, vector<8x96xf32>
    %40 = vector.extract_strided_slice %38 {offsets = [0, 0], sizes = [8, 96], strides = [1, 1]} : vector<8x384xf32> to vector<8x96xf32>
    %41 = vector.extract_strided_slice %39 {offsets = [0, 0], sizes = [8, 64], strides = [1, 1]} : vector<8x96xf32> to vector<8x64xf32>
    %42 = vector.extract_strided_slice %40 {offsets = [0, 0], sizes = [8, 64], strides = [1, 1]} : vector<8x96xf32> to vector<8x64xf32>
    %43 = arith.addf %41, %42 : vector<8x64xf32>
    %44 = arith.negf %43 : vector<8x64xf32>
    %45 = math.exp %44 : vector<8x64xf32>
    %cst_18 = arith.constant 1.000000e+00 : f32
    %46 = vector.broadcast %cst_18 : f32 to vector<8x64xf32>
    %47 = arith.addf %46, %45 : vector<8x64xf32>
    %48 = arith.divf %46, %47 : vector<8x64xf32>
    %49 = vector.extract_strided_slice %48 {offsets = [0, 0], sizes = [8, 32], strides = [1, 1]} : vector<8x64xf32> to vector<8x32xf32>
    %50 = vector.extract_strided_slice %48 {offsets = [0, 32], sizes = [8, 32], strides = [1, 1]} : vector<8x64xf32> to vector<8x32xf32>
    %51 = vector.extract_strided_slice %39 {offsets = [0, 64], sizes = [8, 32], strides = [1, 1]} : vector<8x96xf32> to vector<8x32xf32>
    %52 = vector.extract_strided_slice %40 {offsets = [0, 64], sizes = [8, 32], strides = [1, 1]} : vector<8x96xf32> to vector<8x32xf32>
    %53 = arith.mulf %49, %52 : vector<8x32xf32>
    %54 = arith.addf %51, %53 : vector<8x32xf32>
    %55 = math.tanh %54 : vector<8x32xf32>
    %cst_19 = arith.constant 1.000000e+00 : f32
    %56 = vector.broadcast %cst_19 : f32 to vector<8x32xf32>
    %57 = arith.subf %56, %50 : vector<8x32xf32>
    %58 = arith.mulf %57, %55 : vector<8x32xf32>
    %59 = arith.mulf %50, %34 : vector<8x32xf32>
    %60 = arith.addf %58, %59 : vector<8x32xf32>
    %61 = vector.extract_strided_slice %38 {offsets = [0, 128], sizes = [8, 96], strides = [1, 1]} : vector<8x384xf32> to vector<8x96xf32>
    %62 = vector.extract_strided_slice %38 {offsets = [0, 256], sizes = [8, 96], strides = [1, 1]} : vector<8x384xf32> to vector<8x96xf32>
    %63 = vector.extract_strided_slice %61 {offsets = [0, 0], sizes = [8, 64], strides = [1, 1]} : vector<8x96xf32> to vector<8x64xf32>
    %64 = vector.extract_strided_slice %62 {offsets = [0, 0], sizes = [8, 64], strides = [1, 1]} : vector<8x96xf32> to vector<8x64xf32>
    %65 = arith.addf %63, %64 : vector<8x64xf32>
    %66 = arith.negf %65 : vector<8x64xf32>
    %67 = math.exp %66 : vector<8x64xf32>
    %cst_20 = arith.constant 1.000000e+00 : f32
    %68 = vector.broadcast %cst_20 : f32 to vector<8x64xf32>
    %69 = arith.addf %68, %67 : vector<8x64xf32>
    %70 = arith.divf %68, %69 : vector<8x64xf32>
    %71 = vector.extract_strided_slice %70 {offsets = [0, 0], sizes = [8, 32], strides = [1, 1]} : vector<8x64xf32> to vector<8x32xf32>
    %72 = vector.extract_strided_slice %70 {offsets = [0, 32], sizes = [8, 32], strides = [1, 1]} : vector<8x64xf32> to vector<8x32xf32>
    %73 = vector.extract_strided_slice %61 {offsets = [0, 64], sizes = [8, 32], strides = [1, 1]} : vector<8x96xf32> to vector<8x32xf32>
    %74 = vector.extract_strided_slice %62 {offsets = [0, 64], sizes = [8, 32], strides = [1, 1]} : vector<8x96xf32> to vector<8x32xf32>
    %75 = arith.mulf %71, %74 : vector<8x32xf32>
    %76 = arith.addf %73, %75 : vector<8x32xf32>
    %77 = math.tanh %76 : vector<8x32xf32>
    %cst_21 = arith.constant 1.000000e+00 : f32
    %78 = vector.broadcast %cst_21 : f32 to vector<8x32xf32>
    %79 = arith.subf %78, %72 : vector<8x32xf32>
    %80 = arith.mulf %79, %77 : vector<8x32xf32>
    %81 = arith.mulf %72, %12 : vector<8x32xf32>
    %82 = arith.addf %80, %81 : vector<8x32xf32>
    %83 = tpu.concatenate %60, %82 in 1 : vector<8x32xf32>, vector<8x32xf32> -> vector<8x64xf32>
    %84 = arith.truncf %83 : vector<8x64xf32> to vector<8x64xbf16>
    %cst_22 = arith.constant dense<0.000000e+00> : vector<8x384xf32>
    %85 = tpu.matmul %84, %8, %cst_22 {dimension_numbers = #tpu.dot_dimension_numbers<[1], [0], [0], [1], [0, 0, 1, 1], [], []>} : vector<8x64xbf16>, vector<64x384xbf16>, vector<8x384xf32> -> vector<8x384xf32>
    %86 = arith.addf %85, %11 : vector<8x384xf32>
    %c16 = arith.constant 16 : index
    %c0_23 = arith.constant 0 : index
    %87 = vector.load %arg6[%c16, %c0_23] : memref<64x96xf32, #tpu.memory_space<vmem>>, vector<8x96xf32>
    %88 = vector.extract_strided_slice %86 {offsets = [0, 0], sizes = [8, 96], strides = [1, 1]} : vector<8x384xf32> to vector<8x96xf32>
    %89 = vector.extract_strided_slice %87 {offsets = [0, 0], sizes = [8, 64], strides = [1, 1]} : vector<8x96xf32> to vector<8x64xf32>
    %90 = vector.extract_strided_slice %88 {offsets = [0, 0], sizes = [8, 64], strides = [1, 1]} : vector<8x96xf32> to vector<8x64xf32>
    %91 = arith.addf %89, %90 : vector<8x64xf32>
    %92 = arith.negf %91 : vector<8x64xf32>
    %93 = math.exp %92 : vector<8x64xf32>
    %cst_24 = arith.constant 1.000000e+00 : f32
    %94 = vector.broadcast %cst_24 : f32 to vector<8x64xf32>
    %95 = arith.addf %94, %93 : vector<8x64xf32>
    %96 = arith.divf %94, %95 : vector<8x64xf32>
    %97 = vector.extract_strided_slice %96 {offsets = [0, 0], sizes = [8, 32], strides = [1, 1]} : vector<8x64xf32> to vector<8x32xf32>
    %98 = vector.extract_strided_slice %96 {offsets = [0, 32], sizes = [8, 32], strides = [1, 1]} : vector<8x64xf32> to vector<8x32xf32>
    %99 = vector.extract_strided_slice %87 {offsets = [0, 64], sizes = [8, 32], strides = [1, 1]} : vector<8x96xf32> to vector<8x32xf32>
    %100 = vector.extract_strided_slice %88 {offsets = [0, 64], sizes = [8, 32], strides = [1, 1]} : vector<8x96xf32> to vector<8x32xf32>
    %101 = arith.mulf %97, %100 : vector<8x32xf32>
    %102 = arith.addf %99, %101 : vector<8x32xf32>
    %103 = math.tanh %102 : vector<8x32xf32>
    %cst_25 = arith.constant 1.000000e+00 : f32
    %104 = vector.broadcast %cst_25 : f32 to vector<8x32xf32>
    %105 = arith.subf %104, %98 : vector<8x32xf32>
    %106 = arith.mulf %105, %103 : vector<8x32xf32>
    %107 = arith.mulf %98, %60 : vector<8x32xf32>
    %108 = arith.addf %106, %107 : vector<8x32xf32>
    %109 = vector.extract_strided_slice %86 {offsets = [0, 128], sizes = [8, 96], strides = [1, 1]} : vector<8x384xf32> to vector<8x96xf32>
    %110 = vector.extract_strided_slice %86 {offsets = [0, 256], sizes = [8, 96], strides = [1, 1]} : vector<8x384xf32> to vector<8x96xf32>
    %111 = vector.extract_strided_slice %109 {offsets = [0, 0], sizes = [8, 64], strides = [1, 1]} : vector<8x96xf32> to vector<8x64xf32>
    %112 = vector.extract_strided_slice %110 {offsets = [0, 0], sizes = [8, 64], strides = [1, 1]} : vector<8x96xf32> to vector<8x64xf32>
    %113 = arith.addf %111, %112 : vector<8x64xf32>
    %114 = arith.negf %113 : vector<8x64xf32>
    %115 = math.exp %114 : vector<8x64xf32>
    %cst_26 = arith.constant 1.000000e+00 : f32
    %116 = vector.broadcast %cst_26 : f32 to vector<8x64xf32>
    %117 = arith.addf %116, %115 : vector<8x64xf32>
    %118 = arith.divf %116, %117 : vector<8x64xf32>
    %119 = vector.extract_strided_slice %118 {offsets = [0, 0], sizes = [8, 32], strides = [1, 1]} : vector<8x64xf32> to vector<8x32xf32>
    %120 = vector.extract_strided_slice %118 {offsets = [0, 32], sizes = [8, 32], strides = [1, 1]} : vector<8x64xf32> to vector<8x32xf32>
    %121 = vector.extract_strided_slice %109 {offsets = [0, 64], sizes = [8, 32], strides = [1, 1]} : vector<8x96xf32> to vector<8x32xf32>
    %122 = vector.extract_strided_slice %110 {offsets = [0, 64], sizes = [8, 32], strides = [1, 1]} : vector<8x96xf32> to vector<8x32xf32>
    %123 = arith.mulf %119, %122 : vector<8x32xf32>
    %124 = arith.addf %121, %123 : vector<8x32xf32>
    %125 = math.tanh %124 : vector<8x32xf32>
    %cst_27 = arith.constant 1.000000e+00 : f32
    %126 = vector.broadcast %cst_27 : f32 to vector<8x32xf32>
    %127 = arith.subf %126, %120 : vector<8x32xf32>
    %128 = arith.mulf %127, %125 : vector<8x32xf32>
    %129 = arith.mulf %120, %82 : vector<8x32xf32>
    %130 = arith.addf %128, %129 : vector<8x32xf32>
    %131 = tpu.concatenate %108, %130 in 1 : vector<8x32xf32>, vector<8x32xf32> -> vector<8x64xf32>
    %132 = arith.truncf %131 : vector<8x64xf32> to vector<8x64xbf16>
    %cst_28 = arith.constant dense<0.000000e+00> : vector<8x384xf32>
    %133 = tpu.matmul %132, %8, %cst_28 {dimension_numbers = #tpu.dot_dimension_numbers<[1], [0], [0], [1], [0, 0, 1, 1], [], []>} : vector<8x64xbf16>, vector<64x384xbf16>, vector<8x384xf32> -> vector<8x384xf32>
    %134 = arith.addf %133, %11 : vector<8x384xf32>
    %c24 = arith.constant 24 : index
    %c0_29 = arith.constant 0 : index
    %135 = vector.load %arg6[%c24, %c0_29] : memref<64x96xf32, #tpu.memory_space<vmem>>, vector<8x96xf32>
    %136 = vector.extract_strided_slice %134 {offsets = [0, 0], sizes = [8, 96], strides = [1, 1]} : vector<8x384xf32> to vector<8x96xf32>
    %137 = vector.extract_strided_slice %135 {offsets = [0, 0], sizes = [8, 64], strides = [1, 1]} : vector<8x96xf32> to vector<8x64xf32>
    %138 = vector.extract_strided_slice %136 {offsets = [0, 0], sizes = [8, 64], strides = [1, 1]} : vector<8x96xf32> to vector<8x64xf32>
    %139 = arith.addf %137, %138 : vector<8x64xf32>
    %140 = arith.negf %139 : vector<8x64xf32>
    %141 = math.exp %140 : vector<8x64xf32>
    %cst_30 = arith.constant 1.000000e+00 : f32
    %142 = vector.broadcast %cst_30 : f32 to vector<8x64xf32>
    %143 = arith.addf %142, %141 : vector<8x64xf32>
    %144 = arith.divf %142, %143 : vector<8x64xf32>
    %145 = vector.extract_strided_slice %144 {offsets = [0, 0], sizes = [8, 32], strides = [1, 1]} : vector<8x64xf32> to vector<8x32xf32>
    %146 = vector.extract_strided_slice %144 {offsets = [0, 32], sizes = [8, 32], strides = [1, 1]} : vector<8x64xf32> to vector<8x32xf32>
    %147 = vector.extract_strided_slice %135 {offsets = [0, 64], sizes = [8, 32], strides = [1, 1]} : vector<8x96xf32> to vector<8x32xf32>
    %148 = vector.extract_strided_slice %136 {offsets = [0, 64], sizes = [8, 32], strides = [1, 1]} : vector<8x96xf32> to vector<8x32xf32>
    %149 = arith.mulf %145, %148 : vector<8x32xf32>
    %150 = arith.addf %147, %149 : vector<8x32xf32>
    %151 = math.tanh %150 : vector<8x32xf32>
    %cst_31 = arith.constant 1.000000e+00 : f32
    %152 = vector.broadcast %cst_31 : f32 to vector<8x32xf32>
    %153 = arith.subf %152, %146 : vector<8x32xf32>
    %154 = arith.mulf %153, %151 : vector<8x32xf32>
    %155 = arith.mulf %146, %108 : vector<8x32xf32>
    %156 = arith.addf %154, %155 : vector<8x32xf32>
    %157 = vector.extract_strided_slice %134 {offsets = [0, 128], sizes = [8, 96], strides = [1, 1]} : vector<8x384xf32> to vector<8x96xf32>
    %158 = vector.extract_strided_slice %134 {offsets = [0, 256], sizes = [8, 96], strides = [1, 1]} : vector<8x384xf32> to vector<8x96xf32>
    %159 = vector.extract_strided_slice %157 {offsets = [0, 0], sizes = [8, 64], strides = [1, 1]} : vector<8x96xf32> to vector<8x64xf32>
    %160 = vector.extract_strided_slice %158 {offsets = [0, 0], sizes = [8, 64], strides = [1, 1]} : vector<8x96xf32> to vector<8x64xf32>
    %161 = arith.addf %159, %160 : vector<8x64xf32>
    %162 = arith.negf %161 : vector<8x64xf32>
    %163 = math.exp %162 : vector<8x64xf32>
    %cst_32 = arith.constant 1.000000e+00 : f32
    %164 = vector.broadcast %cst_32 : f32 to vector<8x64xf32>
    %165 = arith.addf %164, %163 : vector<8x64xf32>
    %166 = arith.divf %164, %165 : vector<8x64xf32>
    %167 = vector.extract_strided_slice %166 {offsets = [0, 0], sizes = [8, 32], strides = [1, 1]} : vector<8x64xf32> to vector<8x32xf32>
    %168 = vector.extract_strided_slice %166 {offsets = [0, 32], sizes = [8, 32], strides = [1, 1]} : vector<8x64xf32> to vector<8x32xf32>
    %169 = vector.extract_strided_slice %157 {offsets = [0, 64], sizes = [8, 32], strides = [1, 1]} : vector<8x96xf32> to vector<8x32xf32>
    %170 = vector.extract_strided_slice %158 {offsets = [0, 64], sizes = [8, 32], strides = [1, 1]} : vector<8x96xf32> to vector<8x32xf32>
    %171 = arith.mulf %167, %170 : vector<8x32xf32>
    %172 = arith.addf %169, %171 : vector<8x32xf32>
    %173 = math.tanh %172 : vector<8x32xf32>
    %cst_33 = arith.constant 1.000000e+00 : f32
    %174 = vector.broadcast %cst_33 : f32 to vector<8x32xf32>
    %175 = arith.subf %174, %168 : vector<8x32xf32>
    %176 = arith.mulf %175, %173 : vector<8x32xf32>
    %177 = arith.mulf %168, %130 : vector<8x32xf32>
    %178 = arith.addf %176, %177 : vector<8x32xf32>
    %179 = tpu.concatenate %156, %178 in 1 : vector<8x32xf32>, vector<8x32xf32> -> vector<8x64xf32>
    %180 = arith.truncf %179 : vector<8x64xf32> to vector<8x64xbf16>
    %cst_34 = arith.constant dense<0.000000e+00> : vector<8x384xf32>
    %181 = tpu.matmul %180, %8, %cst_34 {dimension_numbers = #tpu.dot_dimension_numbers<[1], [0], [0], [1], [0, 0, 1, 1], [], []>} : vector<8x64xbf16>, vector<64x384xbf16>, vector<8x384xf32> -> vector<8x384xf32>
    %182 = arith.addf %181, %11 : vector<8x384xf32>
    %c32 = arith.constant 32 : index
    %c0_35 = arith.constant 0 : index
    %183 = vector.load %arg6[%c32, %c0_35] : memref<64x96xf32, #tpu.memory_space<vmem>>, vector<8x96xf32>
    %184 = vector.extract_strided_slice %182 {offsets = [0, 0], sizes = [8, 96], strides = [1, 1]} : vector<8x384xf32> to vector<8x96xf32>
    %185 = vector.extract_strided_slice %183 {offsets = [0, 0], sizes = [8, 64], strides = [1, 1]} : vector<8x96xf32> to vector<8x64xf32>
    %186 = vector.extract_strided_slice %184 {offsets = [0, 0], sizes = [8, 64], strides = [1, 1]} : vector<8x96xf32> to vector<8x64xf32>
    %187 = arith.addf %185, %186 : vector<8x64xf32>
    %188 = arith.negf %187 : vector<8x64xf32>
    %189 = math.exp %188 : vector<8x64xf32>
    %cst_36 = arith.constant 1.000000e+00 : f32
    %190 = vector.broadcast %cst_36 : f32 to vector<8x64xf32>
    %191 = arith.addf %190, %189 : vector<8x64xf32>
    %192 = arith.divf %190, %191 : vector<8x64xf32>
    %193 = vector.extract_strided_slice %192 {offsets = [0, 0], sizes = [8, 32], strides = [1, 1]} : vector<8x64xf32> to vector<8x32xf32>
    %194 = vector.extract_strided_slice %192 {offsets = [0, 32], sizes = [8, 32], strides = [1, 1]} : vector<8x64xf32> to vector<8x32xf32>
    %195 = vector.extract_strided_slice %183 {offsets = [0, 64], sizes = [8, 32], strides = [1, 1]} : vector<8x96xf32> to vector<8x32xf32>
    %196 = vector.extract_strided_slice %184 {offsets = [0, 64], sizes = [8, 32], strides = [1, 1]} : vector<8x96xf32> to vector<8x32xf32>
    %197 = arith.mulf %193, %196 : vector<8x32xf32>
    %198 = arith.addf %195, %197 : vector<8x32xf32>
    %199 = math.tanh %198 : vector<8x32xf32>
    %cst_37 = arith.constant 1.000000e+00 : f32
    %200 = vector.broadcast %cst_37 : f32 to vector<8x32xf32>
    %201 = arith.subf %200, %194 : vector<8x32xf32>
    %202 = arith.mulf %201, %199 : vector<8x32xf32>
    %203 = arith.mulf %194, %156 : vector<8x32xf32>
    %204 = arith.addf %202, %203 : vector<8x32xf32>
    %205 = vector.extract_strided_slice %182 {offsets = [0, 128], sizes = [8, 96], strides = [1, 1]} : vector<8x384xf32> to vector<8x96xf32>
    %206 = vector.extract_strided_slice %182 {offsets = [0, 256], sizes = [8, 96], strides = [1, 1]} : vector<8x384xf32> to vector<8x96xf32>
    %207 = vector.extract_strided_slice %205 {offsets = [0, 0], sizes = [8, 64], strides = [1, 1]} : vector<8x96xf32> to vector<8x64xf32>
    %208 = vector.extract_strided_slice %206 {offsets = [0, 0], sizes = [8, 64], strides = [1, 1]} : vector<8x96xf32> to vector<8x64xf32>
    %209 = arith.addf %207, %208 : vector<8x64xf32>
    %210 = arith.negf %209 : vector<8x64xf32>
    %211 = math.exp %210 : vector<8x64xf32>
    %cst_38 = arith.constant 1.000000e+00 : f32
    %212 = vector.broadcast %cst_38 : f32 to vector<8x64xf32>
    %213 = arith.addf %212, %211 : vector<8x64xf32>
    %214 = arith.divf %212, %213 : vector<8x64xf32>
    %215 = vector.extract_strided_slice %214 {offsets = [0, 0], sizes = [8, 32], strides = [1, 1]} : vector<8x64xf32> to vector<8x32xf32>
    %216 = vector.extract_strided_slice %214 {offsets = [0, 32], sizes = [8, 32], strides = [1, 1]} : vector<8x64xf32> to vector<8x32xf32>
    %217 = vector.extract_strided_slice %205 {offsets = [0, 64], sizes = [8, 32], strides = [1, 1]} : vector<8x96xf32> to vector<8x32xf32>
    %218 = vector.extract_strided_slice %206 {offsets = [0, 64], sizes = [8, 32], strides = [1, 1]} : vector<8x96xf32> to vector<8x32xf32>
    %219 = arith.mulf %215, %218 : vector<8x32xf32>
    %220 = arith.addf %217, %219 : vector<8x32xf32>
    %221 = math.tanh %220 : vector<8x32xf32>
    %cst_39 = arith.constant 1.000000e+00 : f32
    %222 = vector.broadcast %cst_39 : f32 to vector<8x32xf32>
    %223 = arith.subf %222, %216 : vector<8x32xf32>
    %224 = arith.mulf %223, %221 : vector<8x32xf32>
    %225 = arith.mulf %216, %178 : vector<8x32xf32>
    %226 = arith.addf %224, %225 : vector<8x32xf32>
    %227 = tpu.concatenate %204, %226 in 1 : vector<8x32xf32>, vector<8x32xf32> -> vector<8x64xf32>
    %228 = arith.truncf %227 : vector<8x64xf32> to vector<8x64xbf16>
    %cst_40 = arith.constant dense<0.000000e+00> : vector<8x384xf32>
    %229 = tpu.matmul %228, %8, %cst_40 {dimension_numbers = #tpu.dot_dimension_numbers<[1], [0], [0], [1], [0, 0, 1, 1], [], []>} : vector<8x64xbf16>, vector<64x384xbf16>, vector<8x384xf32> -> vector<8x384xf32>
    %230 = arith.addf %229, %11 : vector<8x384xf32>
    %c40 = arith.constant 40 : index
    %c0_41 = arith.constant 0 : index
    %231 = vector.load %arg6[%c40, %c0_41] : memref<64x96xf32, #tpu.memory_space<vmem>>, vector<8x96xf32>
    %232 = vector.extract_strided_slice %230 {offsets = [0, 0], sizes = [8, 96], strides = [1, 1]} : vector<8x384xf32> to vector<8x96xf32>
    %233 = vector.extract_strided_slice %231 {offsets = [0, 0], sizes = [8, 64], strides = [1, 1]} : vector<8x96xf32> to vector<8x64xf32>
    %234 = vector.extract_strided_slice %232 {offsets = [0, 0], sizes = [8, 64], strides = [1, 1]} : vector<8x96xf32> to vector<8x64xf32>
    %235 = arith.addf %233, %234 : vector<8x64xf32>
    %236 = arith.negf %235 : vector<8x64xf32>
    %237 = math.exp %236 : vector<8x64xf32>
    %cst_42 = arith.constant 1.000000e+00 : f32
    %238 = vector.broadcast %cst_42 : f32 to vector<8x64xf32>
    %239 = arith.addf %238, %237 : vector<8x64xf32>
    %240 = arith.divf %238, %239 : vector<8x64xf32>
    %241 = vector.extract_strided_slice %240 {offsets = [0, 0], sizes = [8, 32], strides = [1, 1]} : vector<8x64xf32> to vector<8x32xf32>
    %242 = vector.extract_strided_slice %240 {offsets = [0, 32], sizes = [8, 32], strides = [1, 1]} : vector<8x64xf32> to vector<8x32xf32>
    %243 = vector.extract_strided_slice %231 {offsets = [0, 64], sizes = [8, 32], strides = [1, 1]} : vector<8x96xf32> to vector<8x32xf32>
    %244 = vector.extract_strided_slice %232 {offsets = [0, 64], sizes = [8, 32], strides = [1, 1]} : vector<8x96xf32> to vector<8x32xf32>
    %245 = arith.mulf %241, %244 : vector<8x32xf32>
    %246 = arith.addf %243, %245 : vector<8x32xf32>
    %247 = math.tanh %246 : vector<8x32xf32>
    %cst_43 = arith.constant 1.000000e+00 : f32
    %248 = vector.broadcast %cst_43 : f32 to vector<8x32xf32>
    %249 = arith.subf %248, %242 : vector<8x32xf32>
    %250 = arith.mulf %249, %247 : vector<8x32xf32>
    %251 = arith.mulf %242, %204 : vector<8x32xf32>
    %252 = arith.addf %250, %251 : vector<8x32xf32>
    %253 = vector.extract_strided_slice %230 {offsets = [0, 128], sizes = [8, 96], strides = [1, 1]} : vector<8x384xf32> to vector<8x96xf32>
    %254 = vector.extract_strided_slice %230 {offsets = [0, 256], sizes = [8, 96], strides = [1, 1]} : vector<8x384xf32> to vector<8x96xf32>
    %255 = vector.extract_strided_slice %253 {offsets = [0, 0], sizes = [8, 64], strides = [1, 1]} : vector<8x96xf32> to vector<8x64xf32>
    %256 = vector.extract_strided_slice %254 {offsets = [0, 0], sizes = [8, 64], strides = [1, 1]} : vector<8x96xf32> to vector<8x64xf32>
    %257 = arith.addf %255, %256 : vector<8x64xf32>
    %258 = arith.negf %257 : vector<8x64xf32>
    %259 = math.exp %258 : vector<8x64xf32>
    %cst_44 = arith.constant 1.000000e+00 : f32
    %260 = vector.broadcast %cst_44 : f32 to vector<8x64xf32>
    %261 = arith.addf %260, %259 : vector<8x64xf32>
    %262 = arith.divf %260, %261 : vector<8x64xf32>
    %263 = vector.extract_strided_slice %262 {offsets = [0, 0], sizes = [8, 32], strides = [1, 1]} : vector<8x64xf32> to vector<8x32xf32>
    %264 = vector.extract_strided_slice %262 {offsets = [0, 32], sizes = [8, 32], strides = [1, 1]} : vector<8x64xf32> to vector<8x32xf32>
    %265 = vector.extract_strided_slice %253 {offsets = [0, 64], sizes = [8, 32], strides = [1, 1]} : vector<8x96xf32> to vector<8x32xf32>
    %266 = vector.extract_strided_slice %254 {offsets = [0, 64], sizes = [8, 32], strides = [1, 1]} : vector<8x96xf32> to vector<8x32xf32>
    %267 = arith.mulf %263, %266 : vector<8x32xf32>
    %268 = arith.addf %265, %267 : vector<8x32xf32>
    %269 = math.tanh %268 : vector<8x32xf32>
    %cst_45 = arith.constant 1.000000e+00 : f32
    %270 = vector.broadcast %cst_45 : f32 to vector<8x32xf32>
    %271 = arith.subf %270, %264 : vector<8x32xf32>
    %272 = arith.mulf %271, %269 : vector<8x32xf32>
    %273 = arith.mulf %264, %226 : vector<8x32xf32>
    %274 = arith.addf %272, %273 : vector<8x32xf32>
    %275 = tpu.concatenate %252, %274 in 1 : vector<8x32xf32>, vector<8x32xf32> -> vector<8x64xf32>
    %276 = arith.truncf %275 : vector<8x64xf32> to vector<8x64xbf16>
    %cst_46 = arith.constant dense<0.000000e+00> : vector<8x384xf32>
    %277 = tpu.matmul %276, %8, %cst_46 {dimension_numbers = #tpu.dot_dimension_numbers<[1], [0], [0], [1], [0, 0, 1, 1], [], []>} : vector<8x64xbf16>, vector<64x384xbf16>, vector<8x384xf32> -> vector<8x384xf32>
    %278 = arith.addf %277, %11 : vector<8x384xf32>
    %c48 = arith.constant 48 : index
    %c0_47 = arith.constant 0 : index
    %279 = vector.load %arg6[%c48, %c0_47] : memref<64x96xf32, #tpu.memory_space<vmem>>, vector<8x96xf32>
    %280 = vector.extract_strided_slice %278 {offsets = [0, 0], sizes = [8, 96], strides = [1, 1]} : vector<8x384xf32> to vector<8x96xf32>
    %281 = vector.extract_strided_slice %279 {offsets = [0, 0], sizes = [8, 64], strides = [1, 1]} : vector<8x96xf32> to vector<8x64xf32>
    %282 = vector.extract_strided_slice %280 {offsets = [0, 0], sizes = [8, 64], strides = [1, 1]} : vector<8x96xf32> to vector<8x64xf32>
    %283 = arith.addf %281, %282 : vector<8x64xf32>
    %284 = arith.negf %283 : vector<8x64xf32>
    %285 = math.exp %284 : vector<8x64xf32>
    %cst_48 = arith.constant 1.000000e+00 : f32
    %286 = vector.broadcast %cst_48 : f32 to vector<8x64xf32>
    %287 = arith.addf %286, %285 : vector<8x64xf32>
    %288 = arith.divf %286, %287 : vector<8x64xf32>
    %289 = vector.extract_strided_slice %288 {offsets = [0, 0], sizes = [8, 32], strides = [1, 1]} : vector<8x64xf32> to vector<8x32xf32>
    %290 = vector.extract_strided_slice %288 {offsets = [0, 32], sizes = [8, 32], strides = [1, 1]} : vector<8x64xf32> to vector<8x32xf32>
    %291 = vector.extract_strided_slice %279 {offsets = [0, 64], sizes = [8, 32], strides = [1, 1]} : vector<8x96xf32> to vector<8x32xf32>
    %292 = vector.extract_strided_slice %280 {offsets = [0, 64], sizes = [8, 32], strides = [1, 1]} : vector<8x96xf32> to vector<8x32xf32>
    %293 = arith.mulf %289, %292 : vector<8x32xf32>
    %294 = arith.addf %291, %293 : vector<8x32xf32>
    %295 = math.tanh %294 : vector<8x32xf32>
    %cst_49 = arith.constant 1.000000e+00 : f32
    %296 = vector.broadcast %cst_49 : f32 to vector<8x32xf32>
    %297 = arith.subf %296, %290 : vector<8x32xf32>
    %298 = arith.mulf %297, %295 : vector<8x32xf32>
    %299 = arith.mulf %290, %252 : vector<8x32xf32>
    %300 = arith.addf %298, %299 : vector<8x32xf32>
    %301 = vector.extract_strided_slice %278 {offsets = [0, 128], sizes = [8, 96], strides = [1, 1]} : vector<8x384xf32> to vector<8x96xf32>
    %302 = vector.extract_strided_slice %278 {offsets = [0, 256], sizes = [8, 96], strides = [1, 1]} : vector<8x384xf32> to vector<8x96xf32>
    %303 = vector.extract_strided_slice %301 {offsets = [0, 0], sizes = [8, 64], strides = [1, 1]} : vector<8x96xf32> to vector<8x64xf32>
    %304 = vector.extract_strided_slice %302 {offsets = [0, 0], sizes = [8, 64], strides = [1, 1]} : vector<8x96xf32> to vector<8x64xf32>
    %305 = arith.addf %303, %304 : vector<8x64xf32>
    %306 = arith.negf %305 : vector<8x64xf32>
    %307 = math.exp %306 : vector<8x64xf32>
    %cst_50 = arith.constant 1.000000e+00 : f32
    %308 = vector.broadcast %cst_50 : f32 to vector<8x64xf32>
    %309 = arith.addf %308, %307 : vector<8x64xf32>
    %310 = arith.divf %308, %309 : vector<8x64xf32>
    %311 = vector.extract_strided_slice %310 {offsets = [0, 0], sizes = [8, 32], strides = [1, 1]} : vector<8x64xf32> to vector<8x32xf32>
    %312 = vector.extract_strided_slice %310 {offsets = [0, 32], sizes = [8, 32], strides = [1, 1]} : vector<8x64xf32> to vector<8x32xf32>
    %313 = vector.extract_strided_slice %301 {offsets = [0, 64], sizes = [8, 32], strides = [1, 1]} : vector<8x96xf32> to vector<8x32xf32>
    %314 = vector.extract_strided_slice %302 {offsets = [0, 64], sizes = [8, 32], strides = [1, 1]} : vector<8x96xf32> to vector<8x32xf32>
    %315 = arith.mulf %311, %314 : vector<8x32xf32>
    %316 = arith.addf %313, %315 : vector<8x32xf32>
    %317 = math.tanh %316 : vector<8x32xf32>
    %cst_51 = arith.constant 1.000000e+00 : f32
    %318 = vector.broadcast %cst_51 : f32 to vector<8x32xf32>
    %319 = arith.subf %318, %312 : vector<8x32xf32>
    %320 = arith.mulf %319, %317 : vector<8x32xf32>
    %321 = arith.mulf %312, %274 : vector<8x32xf32>
    %322 = arith.addf %320, %321 : vector<8x32xf32>
    %323 = tpu.concatenate %300, %322 in 1 : vector<8x32xf32>, vector<8x32xf32> -> vector<8x64xf32>
    %324 = arith.truncf %323 : vector<8x64xf32> to vector<8x64xbf16>
    %cst_52 = arith.constant dense<0.000000e+00> : vector<8x384xf32>
    %325 = tpu.matmul %324, %8, %cst_52 {dimension_numbers = #tpu.dot_dimension_numbers<[1], [0], [0], [1], [0, 0, 1, 1], [], []>} : vector<8x64xbf16>, vector<64x384xbf16>, vector<8x384xf32> -> vector<8x384xf32>
    %326 = arith.addf %325, %11 : vector<8x384xf32>
    %c56 = arith.constant 56 : index
    %c0_53 = arith.constant 0 : index
    %327 = vector.load %arg6[%c56, %c0_53] : memref<64x96xf32, #tpu.memory_space<vmem>>, vector<8x96xf32>
    %328 = vector.extract_strided_slice %326 {offsets = [0, 0], sizes = [8, 96], strides = [1, 1]} : vector<8x384xf32> to vector<8x96xf32>
    %329 = vector.extract_strided_slice %327 {offsets = [0, 0], sizes = [8, 64], strides = [1, 1]} : vector<8x96xf32> to vector<8x64xf32>
    %330 = vector.extract_strided_slice %328 {offsets = [0, 0], sizes = [8, 64], strides = [1, 1]} : vector<8x96xf32> to vector<8x64xf32>
    %331 = arith.addf %329, %330 : vector<8x64xf32>
    %332 = arith.negf %331 : vector<8x64xf32>
    %333 = math.exp %332 : vector<8x64xf32>
    %cst_54 = arith.constant 1.000000e+00 : f32
    %334 = vector.broadcast %cst_54 : f32 to vector<8x64xf32>
    %335 = arith.addf %334, %333 : vector<8x64xf32>
    %336 = arith.divf %334, %335 : vector<8x64xf32>
    %337 = vector.extract_strided_slice %336 {offsets = [0, 0], sizes = [8, 32], strides = [1, 1]} : vector<8x64xf32> to vector<8x32xf32>
    %338 = vector.extract_strided_slice %336 {offsets = [0, 32], sizes = [8, 32], strides = [1, 1]} : vector<8x64xf32> to vector<8x32xf32>
    %339 = vector.extract_strided_slice %327 {offsets = [0, 64], sizes = [8, 32], strides = [1, 1]} : vector<8x96xf32> to vector<8x32xf32>
    %340 = vector.extract_strided_slice %328 {offsets = [0, 64], sizes = [8, 32], strides = [1, 1]} : vector<8x96xf32> to vector<8x32xf32>
    %341 = arith.mulf %337, %340 : vector<8x32xf32>
    %342 = arith.addf %339, %341 : vector<8x32xf32>
    %343 = math.tanh %342 : vector<8x32xf32>
    %cst_55 = arith.constant 1.000000e+00 : f32
    %344 = vector.broadcast %cst_55 : f32 to vector<8x32xf32>
    %345 = arith.subf %344, %338 : vector<8x32xf32>
    %346 = arith.mulf %345, %343 : vector<8x32xf32>
    %347 = arith.mulf %338, %300 : vector<8x32xf32>
    %348 = arith.addf %346, %347 : vector<8x32xf32>
    %349 = vector.extract_strided_slice %326 {offsets = [0, 128], sizes = [8, 96], strides = [1, 1]} : vector<8x384xf32> to vector<8x96xf32>
    %350 = vector.extract_strided_slice %326 {offsets = [0, 256], sizes = [8, 96], strides = [1, 1]} : vector<8x384xf32> to vector<8x96xf32>
    %351 = vector.extract_strided_slice %349 {offsets = [0, 0], sizes = [8, 64], strides = [1, 1]} : vector<8x96xf32> to vector<8x64xf32>
    %352 = vector.extract_strided_slice %350 {offsets = [0, 0], sizes = [8, 64], strides = [1, 1]} : vector<8x96xf32> to vector<8x64xf32>
    %353 = arith.addf %351, %352 : vector<8x64xf32>
    %354 = arith.negf %353 : vector<8x64xf32>
    %355 = math.exp %354 : vector<8x64xf32>
    %cst_56 = arith.constant 1.000000e+00 : f32
    %356 = vector.broadcast %cst_56 : f32 to vector<8x64xf32>
    %357 = arith.addf %356, %355 : vector<8x64xf32>
    %358 = arith.divf %356, %357 : vector<8x64xf32>
    %359 = vector.extract_strided_slice %358 {offsets = [0, 0], sizes = [8, 32], strides = [1, 1]} : vector<8x64xf32> to vector<8x32xf32>
    %360 = vector.extract_strided_slice %358 {offsets = [0, 32], sizes = [8, 32], strides = [1, 1]} : vector<8x64xf32> to vector<8x32xf32>
    %361 = vector.extract_strided_slice %349 {offsets = [0, 64], sizes = [8, 32], strides = [1, 1]} : vector<8x96xf32> to vector<8x32xf32>
    %362 = vector.extract_strided_slice %350 {offsets = [0, 64], sizes = [8, 32], strides = [1, 1]} : vector<8x96xf32> to vector<8x32xf32>
    %363 = arith.mulf %359, %362 : vector<8x32xf32>
    %364 = arith.addf %361, %363 : vector<8x32xf32>
    %365 = math.tanh %364 : vector<8x32xf32>
    %cst_57 = arith.constant 1.000000e+00 : f32
    %366 = vector.broadcast %cst_57 : f32 to vector<8x32xf32>
    %367 = arith.subf %366, %360 : vector<8x32xf32>
    %368 = arith.mulf %367, %365 : vector<8x32xf32>
    %369 = arith.mulf %360, %322 : vector<8x32xf32>
    %370 = arith.addf %368, %369 : vector<8x32xf32>
    %371 = tpu.concatenate %348, %370 in 1 : vector<8x32xf32>, vector<8x32xf32> -> vector<8x64xf32>
    %372 = arith.truncf %371 : vector<8x64xf32> to vector<8x64xbf16>
    %cst_58 = arith.constant dense<0.000000e+00> : vector<8x384xf32>
    %373 = tpu.matmul %372, %8, %cst_58 {dimension_numbers = #tpu.dot_dimension_numbers<[1], [0], [0], [1], [0, 0, 1, 1], [], []>} : vector<8x64xbf16>, vector<64x384xbf16>, vector<8x384xf32> -> vector<8x384xf32>
    %374 = arith.addf %373, %11 : vector<8x384xf32>
    %375 = vector.extract_strided_slice %374 {offsets = [0, 128], sizes = [8, 96], strides = [1, 1]} : vector<8x384xf32> to vector<8x96xf32>
    %376 = vector.extract_strided_slice %374 {offsets = [0, 256], sizes = [8, 96], strides = [1, 1]} : vector<8x384xf32> to vector<8x96xf32>
    %377 = vector.extract_strided_slice %375 {offsets = [0, 0], sizes = [8, 64], strides = [1, 1]} : vector<8x96xf32> to vector<8x64xf32>
    %378 = vector.extract_strided_slice %376 {offsets = [0, 0], sizes = [8, 64], strides = [1, 1]} : vector<8x96xf32> to vector<8x64xf32>
    %379 = arith.addf %377, %378 : vector<8x64xf32>
    %380 = arith.negf %379 : vector<8x64xf32>
    %381 = math.exp %380 : vector<8x64xf32>
    %cst_59 = arith.constant 1.000000e+00 : f32
    %382 = vector.broadcast %cst_59 : f32 to vector<8x64xf32>
    %383 = arith.addf %382, %381 : vector<8x64xf32>
    %384 = arith.divf %382, %383 : vector<8x64xf32>
    %385 = vector.extract_strided_slice %384 {offsets = [0, 0], sizes = [8, 32], strides = [1, 1]} : vector<8x64xf32> to vector<8x32xf32>
    %386 = vector.extract_strided_slice %384 {offsets = [0, 32], sizes = [8, 32], strides = [1, 1]} : vector<8x64xf32> to vector<8x32xf32>
    %387 = vector.extract_strided_slice %375 {offsets = [0, 64], sizes = [8, 32], strides = [1, 1]} : vector<8x96xf32> to vector<8x32xf32>
    %388 = vector.extract_strided_slice %376 {offsets = [0, 64], sizes = [8, 32], strides = [1, 1]} : vector<8x96xf32> to vector<8x32xf32>
    %389 = arith.mulf %385, %388 : vector<8x32xf32>
    %390 = arith.addf %387, %389 : vector<8x32xf32>
    %391 = math.tanh %390 : vector<8x32xf32>
    %cst_60 = arith.constant 1.000000e+00 : f32
    %392 = vector.broadcast %cst_60 : f32 to vector<8x32xf32>
    %393 = arith.subf %392, %386 : vector<8x32xf32>
    %394 = arith.mulf %393, %391 : vector<8x32xf32>
    %395 = arith.mulf %386, %370 : vector<8x32xf32>
    %396 = arith.addf %394, %395 : vector<8x32xf32>
    %c0_61 = arith.constant 0 : index
    %c0_62 = arith.constant 0 : index
    %397 = vector.load %arg5[%c0_61, %c0_62] : memref<8x32xf32, #tpu.memory_space<vmem>>, vector<8x32xf32>
    tpu.vector_store %arg5[%c0_61, %c0_62], %396 {strides = array<i32>} : memref<8x32xf32, #tpu.memory_space<vmem>>, vector<8x32xf32>,
    return
  }
}

</mosaic_0001>

<llo_original>
// kernel: recursive_layer_forward.1
$region0: #{recursive_layer_forward.1}
  #allocation0 [shape = 'u32[]', space=smem, size = 0x4, offset = 0x4, fixed_abs, tag = 'smem constant byte address 0x4 - core index']
  #allocation1 [shape = 'u32[144,128]{1,0:T(1,128)}', space=vmem, size = 0x12000, scoped, tag = 'internal scratch']
  #allocation2 [shape = 'f32[64,96]{1,0:T(8,128)}', space=vmem, size = 0x8000, scoped, tag = 'scratch operand']
  %s0 = inlined_call_operand.vmem [shape: f32[64,4], index: 0, kind: input, shape index: {}]
  %s1 = inlined_call_operand.vmem [shape: bf16[4,96], index: 1, kind: input, shape index: {}]
  %s2 = inlined_call_operand.vmem [shape: f32[1,96], index: 2, kind: input, shape index: {}]
  %s3 = inlined_call_operand.vmem [shape: bf16[64,384], index: 3, kind: input, shape index: {}]
  %s4 = inlined_call_operand.vmem [shape: f32[1,384], index: 4, kind: input, shape index: {}]
  %s5 = inlined_call_operand.vmem [shape: f32[8,32], index: 5, kind: output, shape index: {}]
  %s6 = sld [smem:[#allocation0]]
  $region30: #{recursive_layer_forward.1} parent=0
    _
  %s8 = ssub.s32 1, %s6
  %s9 = scalar_select 0, %s8, %s6
  // Predicated region
  $region2: #{recursive_layer_forward.1} parent=0 // pred_check
    _
  $region3: #{recursive_layer_forward.1} parent=0 // pred_check_branch
    %11 = sbr.rel (0) target = $region5
  $region4: #{recursive_layer_forward.1} parent=0 // pred_region
    _
  $region5: #{recursive_layer_forward.1} parent=0 // pred_fallthru
    _
  // Predicated region
  $region6: #{recursive_layer_forward.1} parent=0 // pred_check
    _
  $region7: #{recursive_layer_forward.1} parent=0 // pred_check_branch
    %13 = sbr.rel (0) target = $region9
  $region8: #{recursive_layer_forward.1} parent=0 // pred_region
    _
  $region9: #{recursive_layer_forward.1} parent=0 // pred_fallthru
    _
  // Predicated region
  $region10: #{recursive_layer_forward.1} parent=0 // pred_check
    _
  $region11: #{recursive_layer_forward.1} parent=0 // pred_check_branch
    %15 = sbr.rel (0) target = $region13
  $region12: #{recursive_layer_forward.1} parent=0 // pred_region
    _
  $region13: #{recursive_layer_forward.1} parent=0 // pred_fallthru
    _
  // Predicated region
  $region14: #{recursive_layer_forward.1} parent=0 // pred_check
    _
  $region15: #{recursive_layer_forward.1} parent=0 // pred_check_branch
    %17 = sbr.rel (0) target = $region17
  $region16: #{recursive_layer_forward.1} parent=0 // pred_region
    _
  $region17: #{recursive_layer_forward.1} parent=0 // pred_fallthru
    _
  // Predicated region
  $region18: #{recursive_layer_forward.1} parent=0 // pred_check
    _
  $region19: #{recursive_layer_forward.1} parent=0 // pred_check_branch
    %19 = sbr.rel (0) target = $region21
  $region20: #{recursive_layer_forward.1} parent=0 // pred_region
    _
  $region21: #{recursive_layer_forward.1} parent=0 // pred_fallthru
    _
  %v21 = vld [vmem:[%s0] sm:$0xff]
  %v22 = vld [vmem:[%s0 + $0x8] sm:$0xff]
  %v23 = vld [vmem:[%s0 + $0x10] sm:$0xff]
  %v24 = vld [vmem:[%s0 + $0x18] sm:$0xff]
  %v25 = vld [vmem:[%s0 + $0x20] sm:$0xff]
  %v26 = vld [vmem:[%s0 + $0x28] sm:$0xff]
  %v27 = vld [vmem:[%s0 + $0x30] sm:$0xff]
  %v28 = vld [vmem:[%s0 + $0x38] sm:$0xff]
  %v29 = vpack.c.bf16 %v22, %v21
  %v30 = vpack.c.bf16 %v24, %v23
  %v31 = vpack.c.bf16 %v26, %v25
  %v32 = vpack.c.bf16 %v28, %v27
  %v33 = vld [vmem:[%s1] sm:$0x3]
  %v34 = vld [vmem:[%s2] sm:$0x1]
  %v36 = vlaneseq
  %v37 = vshrl.u32 %v36, 7
  %v38 = vsub.s32 0, %v37
  %v39 = vrot.slane %v34, %v38
  %vm41 = vcmask 31744
  %v43 = vsel %vm41, %v29, 0
  %v46 = vsel %vm41, %v30, 0
  %v49 = vsel %vm41, %v31, 0
  %v52 = vsel %vm41, %v32, 0
  %vm54 = vcmask 1041408
  %v56 = vsel %vm54, %v33, 0
  %58 = vmatprep.subr.bf16.mxu0 0
  %59 = vmatpush1.bf16.msra.mxu0 %v56
  %60 = vmatprep.subr.bf16.mxu0 0
  %61 = vmatpush1.bf16.msra.mxu0 0
  %62 = vmatprep.subr.bf16.mxu0 0
  %63 = vmatpush1.bf16.msra.mxu0 0
  %64 = vmatprep.subr.bf16.mxu0 0
  %65 = vmatpush1.bf16.msra.mxu0 0
  %66 = vmatprep.subr.bf16.mxu0 0
  %67 = vmatpush1.bf16.msra.mxu0 0
  %68 = vmatprep.subr.bf16.mxu0 0
  %69 = vmatpush1.bf16.msra.mxu0 0
  %70 = vmatprep.subr.bf16.mxu0 0
  %71 = vmatpush1.bf16.msra.mxu0 0
  %72 = vmatprep.subr.bf16.mxu0 0
  %73 = vmatpush1.bf16.msra.mxu0 0
  %74 = vmatprep.subr.bf16.mxu0 0
  %75 = vmatpush1.bf16.msra.mxu0 0
  %76 = vmatprep.subr.bf16.mxu0 0
  %77 = vmatpush1.bf16.msra.mxu0 0
  %78 = vmatprep.subr.bf16.mxu0 0
  %79 = vmatpush1.bf16.msra.mxu0 0
  %80 = vmatprep.subr.bf16.mxu0 0
  %81 = vmatpush1.bf16.msra.mxu0 0
  %82 = vmatprep.subr.bf16.mxu0 0
  %83 = vmatpush1.bf16.msra.mxu0 0
  %84 = vmatprep.subr.bf16.mxu0 0
  %85 = vmatpush1.bf16.msra.mxu0 0
  %86 = vmatprep.subr.bf16.mxu0 0
  %87 = vmatpush1.bf16.msra.mxu0 0
  %88 = vmatprep.subr.bf16.mxu0 0
  %89 = vmatpush1.bf16.msra.mxu0 0
  %90 = vmatprep.mubr.bf16.mxu0 0
  %91 = vmatmul.mubr.bf16.gmra.mrb[0].mxu0 %v43
  %v92 = vpop.f32.mrb[0].mxu0
  %v93 = vadd.f32 %v39, %v92
  %v94 = vpop.f32.mrb[0].mxu0
  %v95 = vpop.f32.mrb[0].mxu0
  %v96 = vadd.f32 %v39, %v95
  %v97 = vpop.f32.mrb[0].mxu0
  %98 = vmatprep.mubr.bf16.mxu0 0
  %99 = vmatmul.mubr.bf16.gmra.mrb[0].mxu0 %v46
  %v100 = vpop.f32.mrb[0].mxu0
  %v101 = vadd.f32 %v39, %v100
  %v102 = vpop.f32.mrb[0].mxu0
  %v103 = vpop.f32.mrb[0].mxu0
  %v104 = vadd.f32 %v39, %v103
  %v105 = vpop.f32.mrb[0].mxu0
  %106 = vmatprep.mubr.bf16.mxu0 0
  %107 = vmatmul.mubr.bf16.gmra.mrb[0].mxu0 %v49
  %v108 = vpop.f32.mrb[0].mxu0
  %v109 = vadd.f32 %v39, %v108
  %v110 = vpop.f32.mrb[0].mxu0
  %v111 = vpop.f32.mrb[0].mxu0
  %v112 = vadd.f32 %v39, %v111
  %v113 = vpop.f32.mrb[0].mxu0
  %114 = vmatprep.mubr.bf16.mxu0 0
  %115 = vmatmul.mubr.bf16.gmra.mrb[0].mxu0 %v52
  %v116 = vpop.f32.mrb[0].mxu0
  %v117 = vadd.f32 %v39, %v116
  %v118 = vpop.f32.mrb[0].mxu0
  %v119 = vpop.f32.mrb[0].mxu0
  %v120 = vadd.f32 %v39, %v119
  %v121 = vpop.f32.mrb[0].mxu0
  %122 = vdwg.mxu0
  %vm123 = vcmask 785408
  %124 = vst.msk [vmem:[#allocation2] sm:$0xff] %vm123, %v93
  %125 = vst.msk [vmem:[#allocation2 + $0x8] sm:$0xff] %vm123, %v96
  %126 = vst.msk [vmem:[#allocation2 + $0x10] sm:$0xff] %vm123, %v101
  %127 = vst.msk [vmem:[#allocation2 + $0x18] sm:$0xff] %vm123, %v104
  %128 = vst.msk [vmem:[#allocation2 + $0x20] sm:$0xff] %vm123, %v109
  %129 = vst.msk [vmem:[#allocation2 + $0x28] sm:$0xff] %vm123, %v112
  %130 = vst.msk [vmem:[#allocation2 + $0x30] sm:$0xff] %vm123, %v117
  %131 = vst.msk [vmem:[#allocation2 + $0x38] sm:$0xff] %vm123, %v120
  %v132 = vld [vmem:[%s3] sm:$0xff]
  %v133 = vld [vmem:[%s3 + $0x8] sm:$0xf]
  %v134 = vld [vmem:[%s3 + $0xc] sm:$0xff]
  %v135 = vld [vmem:[%s3 + $0x14] sm:$0xf]
  %v136 = vld [vmem:[%s3 + $0x18] sm:$0xff]
  %v137 = vld [vmem:[%s3 + $0x20] sm:$0xf]
  %v138 = vld [vmem:[%s3 + $0x24] sm:$0xff]
  %v139 = vld [vmem:[%s3 + $0x2c] sm:$0xf]
  %v140 = vld [vmem:[%s3 + $0x30] sm:$0xff]
  %v141 = vld [vmem:[%s3 + $0x38] sm:$0xf]
  %v142 = vld [vmem:[%s3 + $0x3c] sm:$0xff]
  %v143 = vld [vmem:[%s3 + $0x44] sm:$0xf]
  %v144 = vld [vmem:[%s3 + $0x48] sm:$0xff]
  %v145 = vld [vmem:[%s3 + $0x50] sm:$0xf]
  %v146 = vld [vmem:[%s3 + $0x54] sm:$0xff]
  %v147 = vld [vmem:[%s3 + $0x5c] sm:$0xf]
  %v148 = vld [vmem:[%s4] sm:$0x7]
  %v150 = vlaneseq
  %v151 = vshrl.u32 %v150, 7
  %v152 = vsub.s32 0, %v151
  %v153 = vrot.slane %v148, %v152
  %v154 = vlaneseq
  %v155 = vshrl.u32 %v154, 7
  %v156 = vsub.s32 1, %v155
  %v157 = vrot.slane %v148, %v156
  %v158 = vlaneseq
  %v159 = vshrl.u32 %v158, 7
  %v160 = vsub.s32 2, %v159
  %v161 = vrot.slane %v148, %v160
  %v165 = vld [vmem:[#allocation2] sm:$0xff]
  %v166 = vadd.f32 %v165, %v153
  %v167 = vxor.u32 %v166, 2147483648
  %v168 = vmul.f32 %v167, 1.442695
  %v169 = vpow.pop %v168
  %v170 = vadd.f32 %v169, 1.0
  %v171 = vrcp.pop %v170
  %v172 = vmul.f32 1.0, %v171
  %173 = vrot.lane.b32.xlu0 %v153, 64
  %v174 = vpop.permute.xlu0 %173
  %v176 = vmul.f32 %v172, %v174
  %178 = vrot.lane.b32.xlu0 %v176, 64
  %v179 = vpop.permute.xlu0 %178
  %v181 = vadd.f32 %v165, %v179
  %v182 = vtanh.pop %v181
  %v183 = vsub.f32 1.0, %v172
  %185 = vrot.lane.b32.xlu0 %v182, 96
  %v186 = vpop.permute.xlu0 %185
  %v188 = vmul.f32 %v183, %v186
  %v189 = vmul.f32 %v172, 0.0
  %v190 = vadd.f32 %v188, %v189
  %192 = vrot.lane.b32.xlu0 %v190, 96
  %v193 = vpop.permute.xlu0 %192
  %vm195 = vcmask 261120
  %v196 = vsel %vm195, %v193, 0.0
  %v197 = vpack.c.bf16 %v196, %v196
  %v214 = vunpack.c.l.b16 %v132
  %v215 = vunpack.c.h.b16 %v132
  %v216 = vunpack.c.l.b16 %v133
  %v217 = vunpack.c.l.b16 %v134
  %v218 = vunpack.c.h.b16 %v134
  %v219 = vunpack.c.l.b16 %v135
  %v220 = vunpack.c.l.b16 %v136
  %v221 = vunpack.c.h.b16 %v136
  %v222 = vunpack.c.l.b16 %v137
  %v223 = vunpack.c.l.b16 %v138
  %v224 = vunpack.c.h.b16 %v138
  %v225 = vunpack.c.l.b16 %v139
  %v226 = vunpack.c.l.b16 %v140
  %v227 = vunpack.c.h.b16 %v140
  %v228 = vunpack.c.l.b16 %v141
  %v229 = vunpack.c.l.b16 %v142
  %v230 = vunpack.c.h.b16 %v142
  %v231 = vunpack.c.l.b16 %v143
  %v232 = vunpack.c.l.b16 %v144
  %v233 = vunpack.c.h.b16 %v144
  %v234 = vunpack.c.l.b16 %v145
  %v235 = vunpack.c.l.b16 %v146
  %v236 = vunpack.c.h.b16 %v146
  %v237 = vunpack.c.l.b16 %v147
  %v238 = vpack.c.b16 %v217, %v214
  %v239 = vpack.c.b16 %v218, %v215
  %v240 = vpack.c.b16 %v219, %v216
  %v241 = vpack.c.b16 %v223, %v220
  %v242 = vpack.c.b16 %v224, %v221
  %v243 = vpack.c.b16 %v225, %v222
  %v244 = vpack.c.b16 %v229, %v226
  %v245 = vpack.c.b16 %v230, %v227
  %v246 = vpack.c.b16 %v231, %v228
  %v247 = vpack.c.b16 %v235, %v232
  %v248 = vpack.c.b16 %v236, %v233
  %v249 = vpack.c.b16 %v237, %v234
  %vm262 = vcmask 523264
  %v264 = vsel %vm262, %v197, 0
  %266 = vmatprep.subr.bf16.mxu0 %v239
  %267 = vmatpush1.bf16.msra.mxu0 %v238
  %268 = vmatprep.subr.bf16.mxu0 %v242
  %269 = vmatpush1.bf16.msra.mxu0 %v241
  %270 = vmatprep.subr.bf16.mxu0 %v245
  %271 = vmatpush1.bf16.msra.mxu0 %v244
  %272 = vmatprep.subr.bf16.mxu0 %v248
  %273 = vmatpush1.bf16.msra.mxu0 %v247
  %274 = vmatprep.subr.bf16.mxu0 0
  %275 = vmatpush1.bf16.msra.mxu0 0
  %276 = vmatprep.subr.bf16.mxu0 0
  %277 = vmatpush1.bf16.msra.mxu0 0
  %278 = vmatprep.subr.bf16.mxu0 0
  %279 = vmatpush1.bf16.msra.mxu0 0
  %280 = vmatprep.subr.bf16.mxu0 0
  %281 = vmatpush1.bf16.msra.mxu0 0
  %282 = vmatprep.subr.bf16.mxu0 0
  %283 = vmatpush1.bf16.msra.mxu0 0
  %284 = vmatprep.subr.bf16.mxu0 0
  %285 = vmatpush1.bf16.msra.mxu0 0
  %286 = vmatprep.subr.bf16.mxu0 0
  %287 = vmatpush1.bf16.msra.mxu0 0
  %288 = vmatprep.subr.bf16.mxu0 0
  %289 = vmatpush1.bf16.msra.mxu0 0
  %290 = vmatprep.subr.bf16.mxu0 0
  %291 = vmatpush1.bf16.msra.mxu0 0
  %292 = vmatprep.subr.bf16.mxu0 0
  %293 = vmatpush1.bf16.msra.mxu0 0
  %294 = vmatprep.subr.bf16.mxu0 0
  %295 = vmatpush1.bf16.msra.mxu0 0
  %296 = vmatprep.subr.bf16.mxu0 0
  %297 = vmatpush1.bf16.msra.mxu0 0
  %298 = vmatprep.mubr.bf16.mxu0 0
  %299 = vmatmul.mubr.bf16.gmra.mrb[0].mxu0 %v264
  %v300 = vpop.f32.mrb[0].mxu0
  %v301 = vadd.f32 %v153, %v300
  %v302 = vpop.f32.mrb[0].mxu0
  %v303 = vadd.f32 %v157, %v302
  %v304 = vpop.f32.mrb[0].mxu0
  %v305 = vpop.f32.mrb[0].mxu0
  %306 = vdwg.mxu0
  %307 = vmatprep.subr.bf16.mxu0 0
  %308 = vmatpush1.bf16.msra.mxu0 %v240
  %309 = vmatprep.subr.bf16.mxu0 0
  %310 = vmatpush1.bf16.msra.mxu0 %v243
  %311 = vmatprep.subr.bf16.mxu0 0
  %312 = vmatpush1.bf16.msra.mxu0 %v246
  %313 = vmatprep.subr.bf16.mxu0 0
  %314 = vmatpush1.bf16.msra.mxu0 %v249
  %315 = vmatprep.subr.bf16.mxu0 0
  %316 = vmatpush1.bf16.msra.mxu0 0
  %317 = vmatprep.subr.bf16.mxu0 0
  %318 = vmatpush1.bf16.msra.mxu0 0
  %319 = vmatprep.subr.bf16.mxu0 0
  %320 = vmatpush1.bf16.msra.mxu0 0
  %321 = vmatprep.subr.bf16.mxu0 0
  %322 = vmatpush1.bf16.msra.mxu0 0
  %323 = vmatprep.subr.bf16.mxu0 0
  %324 = vmatpush1.bf16.msra.mxu0 0
  %325 = vmatprep.subr.bf16.mxu0 0
  %326 = vmatpush1.bf16.msra.mxu0 0
  %327 = vmatprep.subr.bf16.mxu0 0
  %328 = vmatpush1.bf16.msra.mxu0 0
  %329 = vmatprep.subr.bf16.mxu0 0
  %330 = vmatpush1.bf16.msra.mxu0 0
  %331 = vmatprep.subr.bf16.mxu0 0
  %332 = vmatpush1.bf16.msra.mxu0 0
  %333 = vmatprep.subr.bf16.mxu0 0
  %334 = vmatpush1.bf16.msra.mxu0 0
  %335 = vmatprep.subr.bf16.mxu0 0
  %336 = vmatpush1.bf16.msra.mxu0 0
  %337 = vmatprep.subr.bf16.mxu0 0
  %338 = vmatpush1.bf16.msra.mxu0 0
  %339 = vmatprep.mubr.bf16.mxu0 0
  %340 = vmatmul.mubr.bf16.gmra.mrb[0].mxu0 %v264
  %v341 = vpop.f32.mrb[0].mxu0
  %v342 = vadd.f32 %v161, %v341
  %v343 = vpop.f32.mrb[0].mxu0
  %v344 = vpop.f32.mrb[0].mxu0
  %v345 = vpop.f32.mrb[0].mxu0
  %346 = vdwg.mxu0
  %v347 = vld [vmem:[#allocation2 + $0x8] sm:$0xff]
  %v348 = vadd.f32 %v347, %v301
  %v349 = vxor.u32 %v348, 2147483648
  %v350 = vmul.f32 %v349, 1.442695
  %v351 = vpow.pop %v350
  %v352 = vadd.f32 %v351, 1.0
  %v353 = vrcp.pop %v352
  %v354 = vmul.f32 1.0, %v353
  %356 = vrot.lane.b32.xlu0 %v301, 64
  %v357 = vpop.permute.xlu0 %356
  %v359 = vmul.f32 %v354, %v357
  %361 = vrot.lane.b32.xlu0 %v359, 64
  %v362 = vpop.permute.xlu0 %361
  %v364 = vadd.f32 %v347, %v362
  %v365 = vtanh.pop %v364
  %v366 = vsub.f32 1.0, %v354
  %368 = vrot.lane.b32.xlu0 %v365, 96
  %v369 = vpop.permute.xlu0 %368
  %v371 = vmul.f32 %v366, %v369
  %v372 = vmul.f32 %v354, %v190
  %v373 = vadd.f32 %v371, %v372
  %v374 = vadd.f32 %v303, %v342
  %v375 = vxor.u32 %v374, 2147483648
  %v376 = vmul.f32 %v375, 1.442695
  %v377 = vpow.pop %v376
  %v378 = vadd.f32 %v377, 1.0
  %v379 = vrcp.pop %v378
  %v380 = vmul.f32 1.0, %v379
  %382 = vrot.lane.b32.xlu0 %v342, 64
  %v383 = vpop.permute.xlu0 %382
  %v385 = vmul.f32 %v380, %v383
  %387 = vrot.lane.b32.xlu0 %v385, 64
  %v388 = vpop.permute.xlu0 %387
  %v390 = vadd.f32 %v303, %v388
  %v391 = vtanh.pop %v390
  %v392 = vsub.f32 1.0, %v380
  %394 = vrot.lane.b32.xlu0 %v391, 96
  %v395 = vpop.permute.xlu0 %394
  %v397 = vmul.f32 %v392, %v395
  %v398 = vmul.f32 %v380, 0.0
  %v399 = vadd.f32 %v397, %v398
  %401 = vrot.lane.b32.xlu0 %v373, 96
  %v402 = vpop.permute.xlu0 %401
  %v404 = vsel %vm195, %v402, %v399
  %v405 = vpack.c.bf16 %v404, %v404
  %v407 = vsel %vm262, %v405, 0
  %409 = vmatprep.subr.bf16.mxu0 %v239
  %410 = vmatpush1.bf16.msra.mxu0 %v238
  %411 = vmatprep.subr.bf16.mxu0 %v242
  %412 = vmatpush1.bf16.msra.mxu0 %v241
  %413 = vmatprep.subr.bf16.mxu0 %v245
  %414 = vmatpush1.bf16.msra.mxu0 %v244
  %415 = vmatprep.subr.bf16.mxu0 %v248
  %416 = vmatpush1.bf16.msra.mxu0 %v247
  %417 = vmatprep.subr.bf16.mxu0 0
  %418 = vmatpush1.bf16.msra.mxu0 0
  %419 = vmatprep.subr.bf16.mxu0 0
  %420 = vmatpush1.bf16.msra.mxu0 0
  %421 = vmatprep.subr.bf16.mxu0 0
  %422 = vmatpush1.bf16.msra.mxu0 0
  %423 = vmatprep.subr.bf16.mxu0 0
  %424 = vmatpush1.bf16.msra.mxu0 0
  %425 = vmatprep.subr.bf16.mxu0 0
  %426 = vmatpush1.bf16.msra.mxu0 0
  %427 = vmatprep.subr.bf16.mxu0 0
  %428 = vmatpush1.bf16.msra.mxu0 0
  %429 = vmatprep.subr.bf16.mxu0 0
  %430 = vmatpush1.bf16.msra.mxu0 0
  %431 = vmatprep.subr.bf16.mxu0 0
  %432 = vmatpush1.bf16.msra.mxu0 0
  %433 = vmatprep.subr.bf16.mxu0 0
  %434 = vmatpush1.bf16.msra.mxu0 0
  %435 = vmatprep.subr.bf16.mxu0 0
  %436 = vmatpush1.bf16.msra.mxu0 0
  %437 = vmatprep.subr.bf16.mxu0 0
  %438 = vmatpush1.bf16.msra.mxu0 0
  %439 = vmatprep.subr.bf16.mxu0 0
  %440 = vmatpush1.bf16.msra.mxu0 0
  %441 = vmatprep.mubr.bf16.mxu0 0
  %442 = vmatmul.mubr.bf16.gmra.mrb[0].mxu0 %v407
  %v443 = vpop.f32.mrb[0].mxu0
  %v444 = vadd.f32 %v153, %v443
  %v445 = vpop.f32.mrb[0].mxu0
  %v446 = vadd.f32 %v157, %v445
  %v447 = vpop.f32.mrb[0].mxu0
  %v448 = vpop.f32.mrb[0].mxu0
  %449 = vdwg.mxu0
  %450 = vmatprep.subr.bf16.mxu0 0
  %451 = vmatpush1.bf16.msra.mxu0 %v240
  %452 = vmatprep.subr.bf16.mxu0 0
  %453 = vmatpush1.bf16.msra.mxu0 %v243
  %454 = vmatprep.subr.bf16.mxu0 0
  %455 = vmatpush1.bf16.msra.mxu0 %v246
  %456 = vmatprep.subr.bf16.mxu0 0
  %457 = vmatpush1.bf16.msra.mxu0 %v249
  %458 = vmatprep.subr.bf16.mxu0 0
  %459 = vmatpush1.bf16.msra.mxu0 0
  %460 = vmatprep.subr.bf16.mxu0 0
  %461 = vmatpush1.bf16.msra.mxu0 0
  %462 = vmatprep.subr.bf16.mxu0 0
  %463 = vmatpush1.bf16.msra.mxu0 0
  %464 = vmatprep.subr.bf16.mxu0 0
  %465 = vmatpush1.bf16.msra.mxu0 0
  %466 = vmatprep.subr.bf16.mxu0 0
  %467 = vmatpush1.bf16.msra.mxu0 0
  %468 = vmatprep.subr.bf16.mxu0 0
  %469 = vmatpush1.bf16.msra.mxu0 0
  %470 = vmatprep.subr.bf16.mxu0 0
  %471 = vmatpush1.bf16.msra.mxu0 0
  %472 = vmatprep.subr.bf16.mxu0 0
  %473 = vmatpush1.bf16.msra.mxu0 0
  %474 = vmatprep.subr.bf16.mxu0 0
  %475 = vmatpush1.bf16.msra.mxu0 0
  %476 = vmatprep.subr.bf16.mxu0 0
  %477 = vmatpush1.bf16.msra.mxu0 0
  %478 = vmatprep.subr.bf16.mxu0 0
  %479 = vmatpush1.bf16.msra.mxu0 0
  %480 = vmatprep.subr.bf16.mxu0 0
  %481 = vmatpush1.bf16.msra.mxu0 0
  %482 = vmatprep.mubr.bf16.mxu0 0
  %483 = vmatmul.mubr.bf16.gmra.mrb[0].mxu0 %v407
  %v484 = vpop.f32.mrb[0].mxu0
  %v485 = vadd.f32 %v161, %v484
  %v486 = vpop.f32.mrb[0].mxu0
  %v487 = vpop.f32.mrb[0].mxu0
  %v488 = vpop.f32.mrb[0].mxu0
  %489 = vdwg.mxu0
  %v490 = vld [vmem:[#allocation2 + $0x10] sm:$0xff]
  %v491 = vadd.f32 %v490, %v444
  %v492 = vxor.u32 %v491, 2147483648
  %v493 = vmul.f32 %v492, 1.442695
  %v494 = vpow.pop %v493
  %v495 = vadd.f32 %v494, 1.0
  %v496 = vrcp.pop %v495
  %v497 = vmul.f32 1.0, %v496
  %499 = vrot.lane.b32.xlu0 %v444, 64
  %v500 = vpop.permute.xlu0 %499
  %v502 = vmul.f32 %v497, %v500
  %504 = vrot.lane.b32.xlu0 %v502, 64
  %v505 = vpop.permute.xlu0 %504
  %v507 = vadd.f32 %v490, %v505
  %v508 = vtanh.pop %v507
  %v509 = vsub.f32 1.0, %v497
  %511 = vrot.lane.b32.xlu0 %v508, 96
  %v512 = vpop.permute.xlu0 %511
  %v514 = vmul.f32 %v509, %v512
  %v515 = vmul.f32 %v497, %v373
  %v516 = vadd.f32 %v514, %v515
  %v517 = vadd.f32 %v446, %v485
  %v518 = vxor.u32 %v517, 2147483648
  %v519 = vmul.f32 %v518, 1.442695
  %v520 = vpow.pop %v519
  %v521 = vadd.f32 %v520, 1.0
  %v522 = vrcp.pop %v521
  %v523 = vmul.f32 1.0, %v522
  %525 = vrot.lane.b32.xlu0 %v485, 64
  %v526 = vpop.permute.xlu0 %525
  %v528 = vmul.f32 %v523, %v526
  %530 = vrot.lane.b32.xlu0 %v528, 64
  %v531 = vpop.permute.xlu0 %530
  %v533 = vadd.f32 %v446, %v531
  %v534 = vtanh.pop %v533
  %v535 = vsub.f32 1.0, %v523
  %537 = vrot.lane.b32.xlu0 %v534, 96
  %v538 = vpop.permute.xlu0 %537
  %v540 = vmul.f32 %v535, %v538
  %v541 = vmul.f32 %v523, %v399
  %v542 = vadd.f32 %v540, %v541
  %544 = vrot.lane.b32.xlu0 %v516, 96
  %v545 = vpop.permute.xlu0 %544
  %v547 = vsel %vm195, %v545, %v542
  %v548 = vpack.c.bf16 %v547, %v547
  %v550 = vsel %vm262, %v548, 0
  %552 = vmatprep.subr.bf16.mxu0 %v239
  %553 = vmatpush1.bf16.msra.mxu0 %v238
  %554 = vmatprep.subr.bf16.mxu0 %v242
  %555 = vmatpush1.bf16.msra.mxu0 %v241
  %556 = vmatprep.subr.bf16.mxu0 %v245
  %557 = vmatpush1.bf16.msra.mxu0 %v244
  %558 = vmatprep.subr.bf16.mxu0 %v248
  %559 = vmatpush1.bf16.msra.mxu0 %v247
  %560 = vmatprep.subr.bf16.mxu0 0
  %561 = vmatpush1.bf16.msra.mxu0 0
  %562 = vmatprep.subr.bf16.mxu0 0
  %563 = vmatpush1.bf16.msra.mxu0 0
  %564 = vmatprep.subr.bf16.mxu0 0
  %565 = vmatpush1.bf16.msra.mxu0 0
  %566 = vmatprep.subr.bf16.mxu0 0
  %567 = vmatpush1.bf16.msra.mxu0 0
  %568 = vmatprep.subr.bf16.mxu0 0
  %569 = vmatpush1.bf16.msra.mxu0 0
  %570 = vmatprep.subr.bf16.mxu0 0
  %571 = vmatpush1.bf16.msra.mxu0 0
  %572 = vmatprep.subr.bf16.mxu0 0
  %573 = vmatpush1.bf16.msra.mxu0 0
  %574 = vmatprep.subr.bf16.mxu0 0
  %575 = vmatpush1.bf16.msra.mxu0 0
  %576 = vmatprep.subr.bf16.mxu0 0
  %577 = vmatpush1.bf16.msra.mxu0 0
  %578 = vmatprep.subr.bf16.mxu0 0
  %579 = vmatpush1.bf16.msra.mxu0 0
  %580 = vmatprep.subr.bf16.mxu0 0
  %581 = vmatpush1.bf16.msra.mxu0 0
  %582 = vmatprep.subr.bf16.mxu0 0
  %583 = vmatpush1.bf16.msra.mxu0 0
  %584 = vmatprep.mubr.bf16.mxu0 0
  %585 = vmatmul.mubr.bf16.gmra.mrb[0].mxu0 %v550
  %v586 = vpop.f32.mrb[0].mxu0
  %v587 = vadd.f32 %v153, %v586
  %v588 = vpop.f32.mrb[0].mxu0
  %v589 = vadd.f32 %v157, %v588
  %v590 = vpop.f32.mrb[0].mxu0
  %v591 = vpop.f32.mrb[0].mxu0
  %592 = vdwg.mxu0
  %593 = vmatprep.subr.bf16.mxu0 0
  %594 = vmatpush1.bf16.msra.mxu0 %v240
  %595 = vmatprep.subr.bf16.mxu0 0
  %596 = vmatpush1.bf16.msra.mxu0 %v243
  %597 = vmatprep.subr.bf16.mxu0 0
  %598 = vmatpush1.bf16.msra.mxu0 %v246
  %599 = vmatprep.subr.bf16.mxu0 0
  %600 = vmatpush1.bf16.msra.mxu0 %v249
  %601 = vmatprep.subr.bf16.mxu0 0
  %602 = vmatpush1.bf16.msra.mxu0 0
  %603 = vmatprep.subr.bf16.mxu0 0
  %604 = vmatpush1.bf16.msra.mxu0 0
  %605 = vmatprep.subr.bf16.mxu0 0
  %606 = vmatpush1.bf16.msra.mxu0 0
  %607 = vmatprep.subr.bf16.mxu0 0
  %608 = vmatpush1.bf16.msra.mxu0 0
  %609 = vmatprep.subr.bf16.mxu0 0
  %610 = vmatpush1.bf16.msra.mxu0 0
  %611 = vmatprep.subr.bf16.mxu0 0
  %612 = vmatpush1.bf16.msra.mxu0 0
  %613 = vmatprep.subr.bf16.mxu0 0
  %614 = vmatpush1.bf16.msra.mxu0 0
  %615 = vmatprep.subr.bf16.mxu0 0
  %616 = vmatpush1.bf16.msra.mxu0 0
  %617 = vmatprep.subr.bf16.mxu0 0
  %618 = vmatpush1.bf16.msra.mxu0 0
  %619 = vmatprep.subr.bf16.mxu0 0
  %620 = vmatpush1.bf16.msra.mxu0 0
  %621 = vmatprep.subr.bf16.mxu0 0
  %622 = vmatpush1.bf16.msra.mxu0 0
  %623 = vmatprep.subr.bf16.mxu0 0
  %624 = vmatpush1.bf16.msra.mxu0 0
  %625 = vmatprep.mubr.bf16.mxu0 0
  %626 = vmatmul.mubr.bf16.gmra.mrb[0].mxu0 %v550
  %v627 = vpop.f32.mrb[0].mxu0
  %v628 = vadd.f32 %v161, %v627
  %v629 = vpop.f32.mrb[0].mxu0
  %v630 = vpop.f32.mrb[0].mxu0
  %v631 = vpop.f32.mrb[0].mxu0
  %632 = vdwg.mxu0
  %v633 = vld [vmem:[#allocation2 + $0x18] sm:$0xff]
  %v634 = vadd.f32 %v633, %v587
  %v635 = vxor.u32 %v634, 2147483648
  %v636 = vmul.f32 %v635, 1.442695
  %v637 = vpow.pop %v636
  %v638 = vadd.f32 %v637, 1.0
  %v639 = vrcp.pop %v638
  %v640 = vmul.f32 1.0, %v639
  %642 = vrot.lane.b32.xlu0 %v587, 64
  %v643 = vpop.permute.xlu0 %642
  %v645 = vmul.f32 %v640, %v643
  %647 = vrot.lane.b32.xlu0 %v645, 64
  %v648 = vpop.permute.xlu0 %647
  %v650 = vadd.f32 %v633, %v648
  %v651 = vtanh.pop %v650
  %v652 = vsub.f32 1.0, %v640
  %654 = vrot.lane.b32.xlu0 %v651, 96
  %v655 = vpop.permute.xlu0 %654
  %v657 = vmul.f32 %v652, %v655
  %v658 = vmul.f32 %v640, %v516
  %v659 = vadd.f32 %v657, %v658
  %v660 = vadd.f32 %v589, %v628
  %v661 = vxor.u32 %v660, 2147483648
  %v662 = vmul.f32 %v661, 1.442695
  %v663 = vpow.pop %v662
  %v664 = vadd.f32 %v663, 1.0
  %v665 = vrcp.pop %v664
  %v666 = vmul.f32 1.0, %v665
  %668 = vrot.lane.b32.xlu0 %v628, 64
  %v669 = vpop.permute.xlu0 %668
  %v671 = vmul.f32 %v666, %v669
  %673 = vrot.lane.b32.xlu0 %v671, 64
  %v674 = vpop.permute.xlu0 %673
  %v676 = vadd.f32 %v589, %v674
  %v677 = vtanh.pop %v676
  %v678 = vsub.f32 1.0, %v666
  %680 = vrot.lane.b32.xlu0 %v677, 96
  %v681 = vpop.permute.xlu0 %680
  %v683 = vmul.f32 %v678, %v681
  %v684 = vmul.f32 %v666, %v542
  %v685 = vadd.f32 %v683, %v684
  %687 = vrot.lane.b32.xlu0 %v659, 96
  %v688 = vpop.permute.xlu0 %687
  %v690 = vsel %vm195, %v688, %v685
  %v691 = vpack.c.bf16 %v690, %v690
  %v693 = vsel %vm262, %v691, 0
  %695 = vmatprep.subr.bf16.mxu0 %v239
  %696 = vmatpush1.bf16.msra.mxu0 %v238
  %697 = vmatprep.subr.bf16.mxu0 %v242
  %698 = vmatpush1.bf16.msra.mxu0 %v241
  %699 = vmatprep.subr.bf16.mxu0 %v245
  %700 = vmatpush1.bf16.msra.mxu0 %v244
  %701 = vmatprep.subr.bf16.mxu0 %v248
  %702 = vmatpush1.bf16.msra.mxu0 %v247
  %703 = vmatprep.subr.bf16.mxu0 0
  %704 = vmatpush1.bf16.msra.mxu0 0
  %705 = vmatprep.subr.bf16.mxu0 0
  %706 = vmatpush1.bf16.msra.mxu0 0
  %707 = vmatprep.subr.bf16.mxu0 0
  %708 = vmatpush1.bf16.msra.mxu0 0
  %709 = vmatprep.subr.bf16.mxu0 0
  %710 = vmatpush1.bf16.msra.mxu0 0
  %711 = vmatprep.subr.bf16.mxu0 0
  %712 = vmatpush1.bf16.msra.mxu0 0
  %713 = vmatprep.subr.bf16.mxu0 0
  %714 = vmatpush1.bf16.msra.mxu0 0
  %715 = vmatprep.subr.bf16.mxu0 0
  %716 = vmatpush1.bf16.msra.mxu0 0
  %717 = vmatprep.subr.bf16.mxu0 0
  %718 = vmatpush1.bf16.msra.mxu0 0
  %719 = vmatprep.subr.bf16.mxu0 0
  %720 = vmatpush1.bf16.msra.mxu0 0
  %721 = vmatprep.subr.bf16.mxu0 0
  %722 = vmatpush1.bf16.msra.mxu0 0
  %723 = vmatprep.subr.bf16.mxu0 0
  %724 = vmatpush1.bf16.msra.mxu0 0
  %725 = vmatprep.subr.bf16.mxu0 0
  %726 = vmatpush1.bf16.msra.mxu0 0
  %727 = vmatprep.mubr.bf16.mxu0 0
  %728 = vmatmul.mubr.bf16.gmra.mrb[0].mxu0 %v693
  %v729 = vpop.f32.mrb[0].mxu0
  %v730 = vadd.f32 %v153, %v729
  %v731 = vpop.f32.mrb[0].mxu0
  %v732 = vadd.f32 %v157, %v731
  %v733 = vpop.f32.mrb[0].mxu0
  %v734 = vpop.f32.mrb[0].mxu0
  %735 = vdwg.mxu0
  %736 = vmatprep.subr.bf16.mxu0 0
  %737 = vmatpush1.bf16.msra.mxu0 %v240
  %738 = vmatprep.subr.bf16.mxu0 0
  %739 = vmatpush1.bf16.msra.mxu0 %v243
  %740 = vmatprep.subr.bf16.mxu0 0
  %741 = vmatpush1.bf16.msra.mxu0 %v246
  %742 = vmatprep.subr.bf16.mxu0 0
  %743 = vmatpush1.bf16.msra.mxu0 %v249
  %744 = vmatprep.subr.bf16.mxu0 0
  %745 = vmatpush1.bf16.msra.mxu0 0
  %746 = vmatprep.subr.bf16.mxu0 0
  %747 = vmatpush1.bf16.msra.mxu0 0
  %748 = vmatprep.subr.bf16.mxu0 0
  %749 = vmatpush1.bf16.msra.mxu0 0
  %750 = vmatprep.subr.bf16.mxu0 0
  %751 = vmatpush1.bf16.msra.mxu0 0
  %752 = vmatprep.subr.bf16.mxu0 0
  %753 = vmatpush1.bf16.msra.mxu0 0
  %754 = vmatprep.subr.bf16.mxu0 0
  %755 = vmatpush1.bf16.msra.mxu0 0
  %756 = vmatprep.subr.bf16.mxu0 0
  %757 = vmatpush1.bf16.msra.mxu0 0
  %758 = vmatprep.subr.bf16.mxu0 0
  %759 = vmatpush1.bf16.msra.mxu0 0
  %760 = vmatprep.subr.bf16.mxu0 0
  %761 = vmatpush1.bf16.msra.mxu0 0
  %762 = vmatprep.subr.bf16.mxu0 0
  %763 = vmatpush1.bf16.msra.mxu0 0
  %764 = vmatprep.subr.bf16.mxu0 0
  %765 = vmatpush1.bf16.msra.mxu0 0
  %766 = vmatprep.subr.bf16.mxu0 0
  %767 = vmatpush1.bf16.msra.mxu0 0
  %768 = vmatprep.mubr.bf16.mxu0 0
  %769 = vmatmul.mubr.bf16.gmra.mrb[0].mxu0 %v693
  %v770 = vpop.f32.mrb[0].mxu0
  %v771 = vadd.f32 %v161, %v770
  %v772 = vpop.f32.mrb[0].mxu0
  %v773 = vpop.f32.mrb[0].mxu0
  %v774 = vpop.f32.mrb[0].mxu0
  %775 = vdwg.mxu0
  %v776 = vld [vmem:[#allocation2 + $0x20] sm:$0xff]
  %v777 = vadd.f32 %v776, %v730
  %v778 = vxor.u32 %v777, 2147483648
  %v779 = vmul.f32 %v778, 1.442695
  %v780 = vpow.pop %v779
  %v781 = vadd.f32 %v780, 1.0
  %v782 = vrcp.pop %v781
  %v783 = vmul.f32 1.0, %v782
  %785 = vrot.lane.b32.xlu0 %v730, 64
  %v786 = vpop.permute.xlu0 %785
  %v788 = vmul.f32 %v783, %v786
  %790 = vrot.lane.b32.xlu0 %v788, 64
  %v791 = vpop.permute.xlu0 %790
  %v793 = vadd.f32 %v776, %v791
  %v794 = vtanh.pop %v793
  %v795 = vsub.f32 1.0, %v783
  %797 = vrot.lane.b32.xlu0 %v794, 96
  %v798 = vpop.permute.xlu0 %797
  %v800 = vmul.f32 %v795, %v798
  %v801 = vmul.f32 %v783, %v659
  %v802 = vadd.f32 %v800, %v801
  %v803 = vadd.f32 %v732, %v771
  %v804 = vxor.u32 %v803, 2147483648
  %v805 = vmul.f32 %v804, 1.442695
  %v806 = vpow.pop %v805
  %v807 = vadd.f32 %v806, 1.0
  %v808 = vrcp.pop %v807
  %v809 = vmul.f32 1.0, %v808
  %811 = vrot.lane.b32.xlu0 %v771, 64
  %v812 = vpop.permute.xlu0 %811
  %v814 = vmul.f32 %v809, %v812
  %816 = vrot.lane.b32.xlu0 %v814, 64
  %v817 = vpop.permute.xlu0 %816
  %v819 = vadd.f32 %v732, %v817
  %v820 = vtanh.pop %v819
  %v821 = vsub.f32 1.0, %v809
  %823 = vrot.lane.b32.xlu0 %v820, 96
  %v824 = vpop.permute.xlu0 %823
  %v826 = vmul.f32 %v821, %v824
  %v827 = vmul.f32 %v809, %v685
  %v828 = vadd.f32 %v826, %v827
  %830 = vrot.lane.b32.xlu0 %v802, 96
  %v831 = vpop.permute.xlu0 %830
  %v833 = vsel %vm195, %v831, %v828
  %v834 = vpack.c.bf16 %v833, %v833
  %v836 = vsel %vm262, %v834, 0
  %838 = vmatprep.subr.bf16.mxu0 %v239
  %839 = vmatpush1.bf16.msra.mxu0 %v238
  %840 = vmatprep.subr.bf16.mxu0 %v242
  %841 = vmatpush1.bf16.msra.mxu0 %v241
  %842 = vmatprep.subr.bf16.mxu0 %v245
  %843 = vmatpush1.bf16.msra.mxu0 %v244
  %844 = vmatprep.subr.bf16.mxu0 %v248
  %845 = vmatpush1.bf16.msra.mxu0 %v247
  %846 = vmatprep.subr.bf16.mxu0 0
  %847 = vmatpush1.bf16.msra.mxu0 0
  %848 = vmatprep.subr.bf16.mxu0 0
  %849 = vmatpush1.bf16.msra.mxu0 0
  %850 = vmatprep.subr.bf16.mxu0 0
  %851 = vmatpush1.bf16.msra.mxu0 0
  %852 = vmatprep.subr.bf16.mxu0 0
  %853 = vmatpush1.bf16.msra.mxu0 0
  %854 = vmatprep.subr.bf16.mxu0 0
  %855 = vmatpush1.bf16.msra.mxu0 0
  %856 = vmatprep.subr.bf16.mxu0 0
  %857 = vmatpush1.bf16.msra.mxu0 0
  %858 = vmatprep.subr.bf16.mxu0 0
  %859 = vmatpush1.bf16.msra.mxu0 0
  %860 = vmatprep.subr.bf16.mxu0 0
  %861 = vmatpush1.bf16.msra.mxu0 0
  %862 = vmatprep.subr.bf16.mxu0 0
  %863 = vmatpush1.bf16.msra.mxu0 0
  %864 = vmatprep.subr.bf16.mxu0 0
  %865 = vmatpush1.bf16.msra.mxu0 0
  %866 = vmatprep.subr.bf16.mxu0 0
  %867 = vmatpush1.bf16.msra.mxu0 0
  %868 = vmatprep.subr.bf16.mxu0 0
  %869 = vmatpush1.bf16.msra.mxu0 0
  %870 = vmatprep.mubr.bf16.mxu0 0
  %871 = vmatmul.mubr.bf16.gmra.mrb[0].mxu0 %v836
  %v872 = vpop.f32.mrb[0].mxu0
  %v873 = vadd.f32 %v153, %v872
  %v874 = vpop.f32.mrb[0].mxu0
  %v875 = vadd.f32 %v157, %v874
  %v876 = vpop.f32.mrb[0].mxu0
  %v877 = vpop.f32.mrb[0].mxu0
  %878 = vdwg.mxu0
  %879 = vmatprep.subr.bf16.mxu0 0
  %880 = vmatpush1.bf16.msra.mxu0 %v240
  %881 = vmatprep.subr.bf16.mxu0 0
  %882 = vmatpush1.bf16.msra.mxu0 %v243
  %883 = vmatprep.subr.bf16.mxu0 0
  %884 = vmatpush1.bf16.msra.mxu0 %v246
  %885 = vmatprep.subr.bf16.mxu0 0
  %886 = vmatpush1.bf16.msra.mxu0 %v249
  %887 = vmatprep.subr.bf16.mxu0 0
  %888 = vmatpush1.bf16.msra.mxu0 0
  %889 = vmatprep.subr.bf16.mxu0 0
  %890 = vmatpush1.bf16.msra.mxu0 0
  %891 = vmatprep.subr.bf16.mxu0 0
  %892 = vmatpush1.bf16.msra.mxu0 0
  %893 = vmatprep.subr.bf16.mxu0 0
  %894 = vmatpush1.bf16.msra.mxu0 0
  %895 = vmatprep.subr.bf16.mxu0 0
  %896 = vmatpush1.bf16.msra.mxu0 0
  %897 = vmatprep.subr.bf16.mxu0 0
  %898 = vmatpush1.bf16.msra.mxu0 0
  %899 = vmatprep.subr.bf16.mxu0 0
  %900 = vmatpush1.bf16.msra.mxu0 0
  %901 = vmatprep.subr.bf16.mxu0 0
  %902 = vmatpush1.bf16.msra.mxu0 0
  %903 = vmatprep.subr.bf16.mxu0 0
  %904 = vmatpush1.bf16.msra.mxu0 0
  %905 = vmatprep.subr.bf16.mxu0 0
  %906 = vmatpush1.bf16.msra.mxu0 0
  %907 = vmatprep.subr.bf16.mxu0 0
  %908 = vmatpush1.bf16.msra.mxu0 0
  %909 = vmatprep.subr.bf16.mxu0 0
  %910 = vmatpush1.bf16.msra.mxu0 0
  %911 = vmatprep.mubr.bf16.mxu0 0
  %912 = vmatmul.mubr.bf16.gmra.mrb[0].mxu0 %v836
  %v913 = vpop.f32.mrb[0].mxu0
  %v914 = vadd.f32 %v161, %v913
  %v915 = vpop.f32.mrb[0].mxu0
  %v916 = vpop.f32.mrb[0].mxu0
  %v917 = vpop.f32.mrb[0].mxu0
  %918 = vdwg.mxu0
  %v919 = vld [vmem:[#allocation2 + $0x28] sm:$0xff]
  %v920 = vadd.f32 %v919, %v873
  %v921 = vxor.u32 %v920, 2147483648
  %v922 = vmul.f32 %v921, 1.442695
  %v923 = vpow.pop %v922
  %v924 = vadd.f32 %v923, 1.0
  %v925 = vrcp.pop %v924
  %v926 = vmul.f32 1.0, %v925
  %928 = vrot.lane.b32.xlu0 %v873, 64
  %v929 = vpop.permute.xlu0 %928
  %v931 = vmul.f32 %v926, %v929
  %933 = vrot.lane.b32.xlu0 %v931, 64
  %v934 = vpop.permute.xlu0 %933
  %v936 = vadd.f32 %v919, %v934
  %v937 = vtanh.pop %v936
  %v938 = vsub.f32 1.0, %v926
  %940 = vrot.lane.b32.xlu0 %v937, 96
  %v941 = vpop.permute.xlu0 %940
  %v943 = vmul.f32 %v938, %v941
  %v944 = vmul.f32 %v926, %v802
  %v945 = vadd.f32 %v943, %v944
  %v946 = vadd.f32 %v875, %v914
  %v947 = vxor.u32 %v946, 2147483648
  %v948 = vmul.f32 %v947, 1.442695
  %v949 = vpow.pop %v948
  %v950 = vadd.f32 %v949, 1.0
  %v951 = vrcp.pop %v950
  %v952 = vmul.f32 1.0, %v951
  %954 = vrot.lane.b32.xlu0 %v914, 64
  %v955 = vpop.permute.xlu0 %954
  %v957 = vmul.f32 %v952, %v955
  %959 = vrot.lane.b32.xlu0 %v957, 64
  %v960 = vpop.permute.xlu0 %959
  %v962 = vadd.f32 %v875, %v960
  %v963 = vtanh.pop %v962
  %v964 = vsub.f32 1.0, %v952
  %966 = vrot.lane.b32.xlu0 %v963, 96
  %v967 = vpop.permute.xlu0 %966
  %v969 = vmul.f32 %v964, %v967
  %v970 = vmul.f32 %v952, %v828
  %v971 = vadd.f32 %v969, %v970
  %973 = vrot.lane.b32.xlu0 %v945, 96
  %v974 = vpop.permute.xlu0 %973
  %v976 = vsel %vm195, %v974, %v971
  %v977 = vpack.c.bf16 %v976, %v976
  %v979 = vsel %vm262, %v977, 0
  %981 = vmatprep.subr.bf16.mxu0 %v239
  %982 = vmatpush1.bf16.msra.mxu0 %v238
  %983 = vmatprep.subr.bf16.mxu0 %v242
  %984 = vmatpush1.bf16.msra.mxu0 %v241
  %985 = vmatprep.subr.bf16.mxu0 %v245
  %986 = vmatpush1.bf16.msra.mxu0 %v244
  %987 = vmatprep.subr.bf16.mxu0 %v248
  %988 = vmatpush1.bf16.msra.mxu0 %v247
  %989 = vmatprep.subr.bf16.mxu0 0
  %990 = vmatpush1.bf16.msra.mxu0 0
  %991 = vmatprep.subr.bf16.mxu0 0
  %992 = vmatpush1.bf16.msra.mxu0 0
  %993 = vmatprep.subr.bf16.mxu0 0
  %994 = vmatpush1.bf16.msra.mxu0 0
  %995 = vmatprep.subr.bf16.mxu0 0
  %996 = vmatpush1.bf16.msra.mxu0 0
  %997 = vmatprep.subr.bf16.mxu0 0
  %998 = vmatpush1.bf16.msra.mxu0 0
  %999 = vmatprep.subr.bf16.mxu0 0
  %1000 = vmatpush1.bf16.msra.mxu0 0
  %1001 = vmatprep.subr.bf16.mxu0 0
  %1002 = vmatpush1.bf16.msra.mxu0 0
  %1003 = vmatprep.subr.bf16.mxu0 0
  %1004 = vmatpush1.bf16.msra.mxu0 0
  %1005 = vmatprep.subr.bf16.mxu0 0
  %1006 = vmatpush1.bf16.msra.mxu0 0
  %1007 = vmatprep.subr.bf16.mxu0 0
  %1008 = vmatpush1.bf16.msra.mxu0 0
  %1009 = vmatprep.subr.bf16.mxu0 0
  %1010 = vmatpush1.bf16.msra.mxu0 0
  %1011 = vmatprep.subr.bf16.mxu0 0
  %1012 = vmatpush1.bf16.msra.mxu0 0
  %1013 = vmatprep.mubr.bf16.mxu0 0
  %1014 = vmatmul.mubr.bf16.gmra.mrb[0].mxu0 %v979
  %v1015 = vpop.f32.mrb[0].mxu0
  %v1016 = vadd.f32 %v153, %v1015
  %v1017 = vpop.f32.mrb[0].mxu0
  %v1018 = vadd.f32 %v157, %v1017
  %v1019 = vpop.f32.mrb[0].mxu0
  %v1020 = vpop.f32.mrb[0].mxu0
  %1021 = vdwg.mxu0
  %1022 = vmatprep.subr.bf16.mxu0 0
  %1023 = vmatpush1.bf16.msra.mxu0 %v240
  %1024 = vmatprep.subr.bf16.mxu0 0
  %1025 = vmatpush1.bf16.msra.mxu0 %v243
  %1026 = vmatprep.subr.bf16.mxu0 0
  %1027 = vmatpush1.bf16.msra.mxu0 %v246
  %1028 = vmatprep.subr.bf16.mxu0 0
  %1029 = vmatpush1.bf16.msra.mxu0 %v249
  %1030 = vmatprep.subr.bf16.mxu0 0
  %1031 = vmatpush1.bf16.msra.mxu0 0
  %1032 = vmatprep.subr.bf16.mxu0 0
  %1033 = vmatpush1.bf16.msra.mxu0 0
  %1034 = vmatprep.subr.bf16.mxu0 0
  %1035 = vmatpush1.bf16.msra.mxu0 0
  %1036 = vmatprep.subr.bf16.mxu0 0
  %1037 = vmatpush1.bf16.msra.mxu0 0
  %1038 = vmatprep.subr.bf16.mxu0 0
  %1039 = vmatpush1.bf16.msra.mxu0 0
  %1040 = vmatprep.subr.bf16.mxu0 0
  %1041 = vmatpush1.bf16.msra.mxu0 0
  %1042 = vmatprep.subr.bf16.mxu0 0
  %1043 = vmatpush1.bf16.msra.mxu0 0
  %1044 = vmatprep.subr.bf16.mxu0 0
  %1045 = vmatpush1.bf16.msra.mxu0 0
  %1046 = vmatprep.subr.bf16.mxu0 0
  %1047 = vmatpush1.bf16.msra.mxu0 0
  %1048 = vmatprep.subr.bf16.mxu0 0
  %1049 = vmatpush1.bf16.msra.mxu0 0
  %1050 = vmatprep.subr.bf16.mxu0 0
  %1051 = vmatpush1.bf16.msra.mxu0 0
  %1052 = vmatprep.subr.bf16.mxu0 0
  %1053 = vmatpush1.bf16.msra.mxu0 0
  %1054 = vmatprep.mubr.bf16.mxu0 0
  %1055 = vmatmul.mubr.bf16.gmra.mrb[0].mxu0 %v979
  %v1056 = vpop.f32.mrb[0].mxu0
  %v1057 = vadd.f32 %v161, %v1056
  %v1058 = vpop.f32.mrb[0].mxu0
  %v1059 = vpop.f32.mrb[0].mxu0
  %v1060 = vpop.f32.mrb[0].mxu0
  %1061 = vdwg.mxu0
  %v1062 = vld [vmem:[#allocation2 + $0x30] sm:$0xff]
  %v1063 = vadd.f32 %v1062, %v1016
  %v1064 = vxor.u32 %v1063, 2147483648
  %v1065 = vmul.f32 %v1064, 1.442695
  %v1066 = vpow.pop %v1065
  %v1067 = vadd.f32 %v1066, 1.0
  %v1068 = vrcp.pop %v1067
  %v1069 = vmul.f32 1.0, %v1068
  %1071 = vrot.lane.b32.xlu0 %v1016, 64
  %v1072 = vpop.permute.xlu0 %1071
  %v1074 = vmul.f32 %v1069, %v1072
  %1076 = vrot.lane.b32.xlu0 %v1074, 64
  %v1077 = vpop.permute.xlu0 %1076
  %v1079 = vadd.f32 %v1062, %v1077
  %v1080 = vtanh.pop %v1079
  %v1081 = vsub.f32 1.0, %v1069
  %1083 = vrot.lane.b32.xlu0 %v1080, 96
  %v1084 = vpop.permute.xlu0 %1083
  %v1086 = vmul.f32 %v1081, %v1084
  %v1087 = vmul.f32 %v1069, %v945
  %v1088 = vadd.f32 %v1086, %v1087
  %v1089 = vadd.f32 %v1018, %v1057
  %v1090 = vxor.u32 %v1089, 2147483648
  %v1091 = vmul.f32 %v1090, 1.442695
  %v1092 = vpow.pop %v1091
  %v1093 = vadd.f32 %v1092, 1.0
  %v1094 = vrcp.pop %v1093
  %v1095 = vmul.f32 1.0, %v1094
  %1097 = vrot.lane.b32.xlu0 %v1057, 64
  %v1098 = vpop.permute.xlu0 %1097
  %v1100 = vmul.f32 %v1095, %v1098
  %1102 = vrot.lane.b32.xlu0 %v1100, 64
  %v1103 = vpop.permute.xlu0 %1102
  %v1105 = vadd.f32 %v1018, %v1103
  %v1106 = vtanh.pop %v1105
  %v1107 = vsub.f32 1.0, %v1095
  %1109 = vrot.lane.b32.xlu0 %v1106, 96
  %v1110 = vpop.permute.xlu0 %1109
  %v1112 = vmul.f32 %v1107, %v1110
  %v1113 = vmul.f32 %v1095, %v971
  %v1114 = vadd.f32 %v1112, %v1113
  %1116 = vrot.lane.b32.xlu0 %v1088, 96
  %v1117 = vpop.permute.xlu0 %1116
  %v1119 = vsel %vm195, %v1117, %v1114
  %v1120 = vpack.c.bf16 %v1119, %v1119
  %v1122 = vsel %vm262, %v1120, 0
  %1124 = vmatprep.subr.bf16.mxu0 %v239
  %1125 = vmatpush1.bf16.msra.mxu0 %v238
  %1126 = vmatprep.subr.bf16.mxu0 %v242
  %1127 = vmatpush1.bf16.msra.mxu0 %v241
  %1128 = vmatprep.subr.bf16.mxu0 %v245
  %1129 = vmatpush1.bf16.msra.mxu0 %v244
  %1130 = vmatprep.subr.bf16.mxu0 %v248
  %1131 = vmatpush1.bf16.msra.mxu0 %v247
  %1132 = vmatprep.subr.bf16.mxu0 0
  %1133 = vmatpush1.bf16.msra.mxu0 0
  %1134 = vmatprep.subr.bf16.mxu0 0
  %1135 = vmatpush1.bf16.msra.mxu0 0
  %1136 = vmatprep.subr.bf16.mxu0 0
  %1137 = vmatpush1.bf16.msra.mxu0 0
  %1138 = vmatprep.subr.bf16.mxu0 0
  %1139 = vmatpush1.bf16.msra.mxu0 0
  %1140 = vmatprep.subr.bf16.mxu0 0
  %1141 = vmatpush1.bf16.msra.mxu0 0
  %1142 = vmatprep.subr.bf16.mxu0 0
  %1143 = vmatpush1.bf16.msra.mxu0 0
  %1144 = vmatprep.subr.bf16.mxu0 0
  %1145 = vmatpush1.bf16.msra.mxu0 0
  %1146 = vmatprep.subr.bf16.mxu0 0
  %1147 = vmatpush1.bf16.msra.mxu0 0
  %1148 = vmatprep.subr.bf16.mxu0 0
  %1149 = vmatpush1.bf16.msra.mxu0 0
  %1150 = vmatprep.subr.bf16.mxu0 0
  %1151 = vmatpush1.bf16.msra.mxu0 0
  %1152 = vmatprep.subr.bf16.mxu0 0
  %1153 = vmatpush1.bf16.msra.mxu0 0
  %1154 = vmatprep.subr.bf16.mxu0 0
  %1155 = vmatpush1.bf16.msra.mxu0 0
  %1156 = vmatprep.mubr.bf16.mxu0 0
  %1157 = vmatmul.mubr.bf16.gmra.mrb[0].mxu0 %v1122
  %v1158 = vpop.f32.mrb[0].mxu0
  %v1159 = vadd.f32 %v153, %v1158
  %v1160 = vpop.f32.mrb[0].mxu0
  %v1161 = vadd.f32 %v157, %v1160
  %v1162 = vpop.f32.mrb[0].mxu0
  %v1163 = vpop.f32.mrb[0].mxu0
  %1164 = vdwg.mxu0
  %1165 = vmatprep.subr.bf16.mxu0 0
  %1166 = vmatpush1.bf16.msra.mxu0 %v240
  %1167 = vmatprep.subr.bf16.mxu0 0
  %1168 = vmatpush1.bf16.msra.mxu0 %v243
  %1169 = vmatprep.subr.bf16.mxu0 0
  %1170 = vmatpush1.bf16.msra.mxu0 %v246
  %1171 = vmatprep.subr.bf16.mxu0 0
  %1172 = vmatpush1.bf16.msra.mxu0 %v249
  %1173 = vmatprep.subr.bf16.mxu0 0
  %1174 = vmatpush1.bf16.msra.mxu0 0
  %1175 = vmatprep.subr.bf16.mxu0 0
  %1176 = vmatpush1.bf16.msra.mxu0 0
  %1177 = vmatprep.subr.bf16.mxu0 0
  %1178 = vmatpush1.bf16.msra.mxu0 0
  %1179 = vmatprep.subr.bf16.mxu0 0
  %1180 = vmatpush1.bf16.msra.mxu0 0
  %1181 = vmatprep.subr.bf16.mxu0 0
  %1182 = vmatpush1.bf16.msra.mxu0 0
  %1183 = vmatprep.subr.bf16.mxu0 0
  %1184 = vmatpush1.bf16.msra.mxu0 0
  %1185 = vmatprep.subr.bf16.mxu0 0
  %1186 = vmatpush1.bf16.msra.mxu0 0
  %1187 = vmatprep.subr.bf16.mxu0 0
  %1188 = vmatpush1.bf16.msra.mxu0 0
  %1189 = vmatprep.subr.bf16.mxu0 0
  %1190 = vmatpush1.bf16.msra.mxu0 0
  %1191 = vmatprep.subr.bf16.mxu0 0
  %1192 = vmatpush1.bf16.msra.mxu0 0
  %1193 = vmatprep.subr.bf16.mxu0 0
  %1194 = vmatpush1.bf16.msra.mxu0 0
  %1195 = vmatprep.subr.bf16.mxu0 0
  %1196 = vmatpush1.bf16.msra.mxu0 0
  %1197 = vmatprep.mubr.bf16.mxu0 0
  %1198 = vmatmul.mubr.bf16.gmra.mrb[0].mxu0 %v1122
  %v1199 = vpop.f32.mrb[0].mxu0
  %v1200 = vadd.f32 %v161, %v1199
  %v1201 = vpop.f32.mrb[0].mxu0
  %v1202 = vpop.f32.mrb[0].mxu0
  %v1203 = vpop.f32.mrb[0].mxu0
  %1204 = vdwg.mxu0
  %v1205 = vld [vmem:[#allocation2 + $0x38] sm:$0xff]
  %v1206 = vadd.f32 %v1205, %v1159
  %v1207 = vxor.u32 %v1206, 2147483648
  %v1208 = vmul.f32 %v1207, 1.442695
  %v1209 = vpow.pop %v1208
  %v1210 = vadd.f32 %v1209, 1.0
  %v1211 = vrcp.pop %v1210
  %v1212 = vmul.f32 1.0, %v1211
  %1214 = vrot.lane.b32.xlu0 %v1159, 64
  %v1215 = vpop.permute.xlu0 %1214
  %v1217 = vmul.f32 %v1212, %v1215
  %1219 = vrot.lane.b32.xlu0 %v1217, 64
  %v1220 = vpop.permute.xlu0 %1219
  %v1222 = vadd.f32 %v1205, %v1220
  %v1223 = vtanh.pop %v1222
  %v1224 = vsub.f32 1.0, %v1212
  %1226 = vrot.lane.b32.xlu0 %v1223, 96
  %v1227 = vpop.permute.xlu0 %1226
  %v1229 = vmul.f32 %v1224, %v1227
  %v1230 = vmul.f32 %v1212, %v1088
  %v1231 = vadd.f32 %v1229, %v1230
  %v1232 = vadd.f32 %v1161, %v1200
  %v1233 = vxor.u32 %v1232, 2147483648
  %v1234 = vmul.f32 %v1233, 1.442695
  %v1235 = vpow.pop %v1234
  %v1236 = vadd.f32 %v1235, 1.0
  %v1237 = vrcp.pop %v1236
  %v1238 = vmul.f32 1.0, %v1237
  %1240 = vrot.lane.b32.xlu0 %v1200, 64
  %v1241 = vpop.permute.xlu0 %1240
  %v1243 = vmul.f32 %v1238, %v1241
  %1245 = vrot.lane.b32.xlu0 %v1243, 64
  %v1246 = vpop.permute.xlu0 %1245
  %v1248 = vadd.f32 %v1161, %v1246
  %v1249 = vtanh.pop %v1248
  %v1250 = vsub.f32 1.0, %v1238
  %1252 = vrot.lane.b32.xlu0 %v1249, 96
  %v1253 = vpop.permute.xlu0 %1252
  %v1255 = vmul.f32 %v1250, %v1253
  %v1256 = vmul.f32 %v1238, %v1114
  %v1257 = vadd.f32 %v1255, %v1256
  %1259 = vrot.lane.b32.xlu0 %v1231, 96
  %v1260 = vpop.permute.xlu0 %1259
  %v1262 = vsel %vm195, %v1260, %v1257
  %v1263 = vpack.c.bf16 %v1262, %v1262
  %v1265 = vsel %vm262, %v1263, 0
  %1267 = vmatprep.subr.bf16.mxu0 %v239
  %1268 = vmatpush1.bf16.msra.mxu0 %v238
  %1269 = vmatprep.subr.bf16.mxu0 %v242
  %1270 = vmatpush1.bf16.msra.mxu0 %v241
  %1271 = vmatprep.subr.bf16.mxu0 %v245
  %1272 = vmatpush1.bf16.msra.mxu0 %v244
  %1273 = vmatprep.subr.bf16.mxu0 %v248
  %1274 = vmatpush1.bf16.msra.mxu0 %v247
  %1275 = vmatprep.subr.bf16.mxu0 0
  %1276 = vmatpush1.bf16.msra.mxu0 0
  %1277 = vmatprep.subr.bf16.mxu0 0
  %1278 = vmatpush1.bf16.msra.mxu0 0
  %1279 = vmatprep.subr.bf16.mxu0 0
  %1280 = vmatpush1.bf16.msra.mxu0 0
  %1281 = vmatprep.subr.bf16.mxu0 0
  %1282 = vmatpush1.bf16.msra.mxu0 0
  %1283 = vmatprep.subr.bf16.mxu0 0
  %1284 = vmatpush1.bf16.msra.mxu0 0
  %1285 = vmatprep.subr.bf16.mxu0 0
  %1286 = vmatpush1.bf16.msra.mxu0 0
  %1287 = vmatprep.subr.bf16.mxu0 0
  %1288 = vmatpush1.bf16.msra.mxu0 0
  %1289 = vmatprep.subr.bf16.mxu0 0
  %1290 = vmatpush1.bf16.msra.mxu0 0
  %1291 = vmatprep.subr.bf16.mxu0 0
  %1292 = vmatpush1.bf16.msra.mxu0 0
  %1293 = vmatprep.subr.bf16.mxu0 0
  %1294 = vmatpush1.bf16.msra.mxu0 0
  %1295 = vmatprep.subr.bf16.mxu0 0
  %1296 = vmatpush1.bf16.msra.mxu0 0
  %1297 = vmatprep.subr.bf16.mxu0 0
  %1298 = vmatpush1.bf16.msra.mxu0 0
  %1299 = vmatprep.mubr.bf16.mxu0 0
  %1300 = vmatmul.mubr.bf16.gmra.mrb[0].mxu0 %v1265
  %v1301 = vpop.f32.mrb[0].mxu0
  %v1302 = vpop.f32.mrb[0].mxu0
  %v1303 = vadd.f32 %v157, %v1302
  %v1304 = vpop.f32.mrb[0].mxu0
  %v1305 = vpop.f32.mrb[0].mxu0
  %1306 = vdwg.mxu0
  %1307 = vmatprep.subr.bf16.mxu0 0
  %1308 = vmatpush1.bf16.msra.mxu0 %v240
  %1309 = vmatprep.subr.bf16.mxu0 0
  %1310 = vmatpush1.bf16.msra.mxu0 %v243
  %1311 = vmatprep.subr.bf16.mxu0 0
  %1312 = vmatpush1.bf16.msra.mxu0 %v246
  %1313 = vmatprep.subr.bf16.mxu0 0
  %1314 = vmatpush1.bf16.msra.mxu0 %v249
  %1315 = vmatprep.subr.bf16.mxu0 0
  %1316 = vmatpush1.bf16.msra.mxu0 0
  %1317 = vmatprep.subr.bf16.mxu0 0
  %1318 = vmatpush1.bf16.msra.mxu0 0
  %1319 = vmatprep.subr.bf16.mxu0 0
  %1320 = vmatpush1.bf16.msra.mxu0 0
  %1321 = vmatprep.subr.bf16.mxu0 0
  %1322 = vmatpush1.bf16.msra.mxu0 0
  %1323 = vmatprep.subr.bf16.mxu0 0
  %1324 = vmatpush1.bf16.msra.mxu0 0
  %1325 = vmatprep.subr.bf16.mxu0 0
  %1326 = vmatpush1.bf16.msra.mxu0 0
  %1327 = vmatprep.subr.bf16.mxu0 0
  %1328 = vmatpush1.bf16.msra.mxu0 0
  %1329 = vmatprep.subr.bf16.mxu0 0
  %1330 = vmatpush1.bf16.msra.mxu0 0
  %1331 = vmatprep.subr.bf16.mxu0 0
  %1332 = vmatpush1.bf16.msra.mxu0 0
  %1333 = vmatprep.subr.bf16.mxu0 0
  %1334 = vmatpush1.bf16.msra.mxu0 0
  %1335 = vmatprep.subr.bf16.mxu0 0
  %1336 = vmatpush1.bf16.msra.mxu0 0
  %1337 = vmatprep.subr.bf16.mxu0 0
  %1338 = vmatpush1.bf16.msra.mxu0 0
  %1339 = vmatprep.mubr.bf16.mxu0 0
  %1340 = vmatmul.mubr.bf16.gmra.mrb[0].mxu0 %v1265
  %v1341 = vpop.f32.mrb[0].mxu0
  %v1342 = vadd.f32 %v161, %v1341
  %v1343 = vpop.f32.mrb[0].mxu0
  %v1344 = vpop.f32.mrb[0].mxu0
  %v1345 = vpop.f32.mrb[0].mxu0
  %1346 = vdwg.mxu0
  %v1347 = vadd.f32 %v1303, %v1342
  %v1348 = vxor.u32 %v1347, 2147483648
  %v1349 = vmul.f32 %v1348, 1.442695
  %v1350 = vpow.pop %v1349
  %v1351 = vadd.f32 %v1350, 1.0
  %v1352 = vrcp.pop %v1351
  %v1353 = vmul.f32 1.0, %v1352
  %1355 = vrot.lane.b32.xlu0 %v1342, 64
  %v1356 = vpop.permute.xlu0 %1355
  %v1358 = vmul.f32 %v1353, %v1356
  %1360 = vrot.lane.b32.xlu0 %v1358, 64
  %v1361 = vpop.permute.xlu0 %1360
  %v1363 = vadd.f32 %v1303, %v1361
  %v1364 = vtanh.pop %v1363
  %v1365 = vsub.f32 1.0, %v1353
  %1367 = vrot.lane.b32.xlu0 %v1364, 96
  %v1368 = vpop.permute.xlu0 %1367
  %v1370 = vmul.f32 %v1365, %v1368
  %v1371 = vmul.f32 %v1353, %v1257
  %v1372 = vadd.f32 %v1370, %v1371
  %1374 = vrot.lane.b32.xlu0 %v1372, 96
  %v1375 = vpop.permute.xlu0 %1374
  %1377 = vst.msk [vmem:[%s5] sm:$0xff] %vm195, %v1375
  // Predicated region
  $region22: #{recursive_layer_forward.1} parent=0 // pred_check
    _
  $region23: #{recursive_layer_forward.1} parent=0 // pred_check_branch
    %1379 = sbr.rel (0) target = $region25
  $region24: #{recursive_layer_forward.1} parent=0 // pred_region
    _
  $region25: #{recursive_layer_forward.1} parent=0 // pred_fallthru
    _
  // Predicated region
  $region26: #{recursive_layer_forward.1} parent=0 // pred_check
    _
  $region27: #{recursive_layer_forward.1} parent=0 // pred_check_branch
    %1381 = sbr.rel (0) target = $region29
  $region28: #{recursive_layer_forward.1} parent=0 // pred_region
    _
  $region29: #{recursive_layer_forward.1} parent=0 // pred_fallthru
    _

</llo_original>
